<compile_context>
chip_gen: v7x
topology: tpu7x:2x2x1
jax: 0.10.0
libtpu: 0.0.40
codegen_flags: <defaults>
</compile_context>

<pallas_src>
import jax
import jax.numpy as jnp
from jax import lax
from jax.experimental import pallas as pl
from jax.experimental.pallas import tpu as pltpu


def _gelu_tanh(x):
    # TODO(synk): torch F.gelu defaults to the exact erf form; the tanh
    # approximation is used here to guarantee Mosaic lowering (EUP tanh).
    c = 0.7978845608028654  # sqrt(2/pi)
    return 0.5 * x * (1.0 + jnp.tanh(c * (x + 0.044715 * x * x * x)))


def ffn_kernel(x_ref, w_in_ref, b_in_ref, w_dw_ref, b_dw_ref, w_out_ref,
               b_out_ref, o_ref, pad_ref):
    """One batch element per grid step.

    x_ref    : VMEM (1, H, W, C)          input, channels-last
    w_in_ref : VMEM (C, 2*hidden)         project_in 1x1 weights
    b_in_ref : VMEM (1, 2*hidden)
    w_dw_ref : VMEM (9, 2*hidden)         3x3 depthwise taps (row-major ky*3+kx)
    b_dw_ref : VMEM (1, 2*hidden)
    w_out_ref: VMEM (hidden, dim)         project_out 1x1 weights
    b_out_ref: VMEM (1, dim)
    o_ref    : VMEM (1, H, W, dim)
    pad_ref  : VMEM (H+2, W+2, 2*hidden)  zero-bordered scratch for the dwconv
    """
    _, H, W, C = x_ref.shape
    C2 = w_in_ref.shape[1]
    hidden = C2 // 2

    # --- project_in: 1x1 conv == (H*W, C) @ (C, 2*hidden) on the MXU -------
    x = x_ref[0].reshape(H * W, C)                       # major-dim merge, free
    h = jnp.dot(x, w_in_ref[...], preferred_element_type=jnp.float32)
    h = h + b_in_ref[...]
    h3 = h.reshape(H, W, C2)                             # major-dim split, free

    # --- depthwise 3x3 conv, padding=1 --------------------------------------
    # Halo handled by a zero border in the scratch.  Only the 4 border strips
    # need (re)zeroing each step (the interior is fully overwritten), which
    # keeps the halo correct under megacore grid splitting while avoiding a
    # full-slab zero store every iteration.
    zero_row = jnp.zeros((1, W + 2, C2), jnp.float32)
    zero_col = jnp.zeros((H, 1, C2), jnp.float32)
    pad_ref[0:1, :, :] = zero_row
    pad_ref[H + 1:H + 2, :, :] = zero_row
    pad_ref[1:H + 1, 0:1, :] = zero_col
    pad_ref[1:H + 1, W + 1:W + 2, :] = zero_col
    pad_ref[1:H + 1, 1:W + 1, :] = h3

    wdw = w_dw_ref[...]                                  # (9, C2)
    # Center tap straight from registers (skips one (H,W,C2) scratch re-read);
    # bias folded into the accumulator init.
    acc = b_dw_ref[...] + h3 * wdw[4:5, :]
    for ky in range(3):                                  # static unroll: 8 taps
        for kx in range(3):
            if ky == 1 and kx == 1:
                continue
            tap = ky * 3 + kx
            acc = acc + pad_ref[ky:ky + H, kx:kx + W, :] * wdw[tap:tap + 1, :]

    # --- gating: gelu(x1) * x2 (chunk along channels) -----------------------
    g = _gelu_tanh(acc[:, :, :hidden]) * acc[:, :, hidden:]

    # --- project_out: (H*W, hidden) @ (hidden, dim) --------------------------
    out = jnp.dot(g.reshape(H * W, hidden), w_out_ref[...],
                  preferred_element_type=jnp.float32)
    out = out + b_out_ref[...]
    o_ref[0] = out.reshape(H, W, o_ref.shape[3]).astype(o_ref.dtype)


def feed_forward(x, w_in, b_in, w_dw, b_dw, w_out, b_out):
    """FeedForward forward pass. x: (B, C, H, W) float32 -> (B, dim, H, W)."""
    B, C, H, W = x.shape
    C2 = w_in.shape[1]
    hidden = C2 // 2
    dim_out = w_out.shape[1]

    # Layout glue only: channels onto the lane axis; weights flattened/2-D.
    x_nhwc = jnp.transpose(x, (0, 2, 3, 1))
    w_dw9 = w_dw.reshape(9, C2)
    b_in2 = b_in.reshape(1, C2)
    b_dw2 = b_dw.reshape(1, C2)
    b_out2 = b_out.reshape(1, dim_out)

    flops = 2 * B * H * W * (C * C2 + 9 * C2 + hidden * dim_out)
    bytes_accessed = 4 * (x.size + B * H * W * dim_out + w_in.size + b_in.size
                          + w_dw.size + b_dw.size + w_out.size + b_out.size)

    # TODO(synk): for very large H*W, tile the H axis with a 1-row halo instead
    # of holding the full (H+2, W+2, 2*hidden) activation slab in VMEM.
    out_nhwc = pl.pallas_call(
        ffn_kernel,
        out_shape=jax.ShapeDtypeStruct((B, H, W, dim_out), x.dtype),
        grid=(B,),
        in_specs=[
            pl.BlockSpec((1, H, W, C), lambda b: (b, 0, 0, 0)),
            pl.BlockSpec((C, C2), lambda b: (0, 0)),
            pl.BlockSpec((1, C2), lambda b: (0, 0)),
            pl.BlockSpec((9, C2), lambda b: (0, 0)),
            pl.BlockSpec((1, C2), lambda b: (0, 0)),
            pl.BlockSpec((hidden, dim_out), lambda b: (0, 0)),
            pl.BlockSpec((1, dim_out), lambda b: (0, 0)),
        ],
        out_specs=pl.BlockSpec((1, H, W, dim_out), lambda b: (b, 0, 0, 0)),
        scratch_shapes=[pltpu.VMEM((H + 2, W + 2, C2), jnp.float32)],
        compiler_params=pltpu.CompilerParams(
            dimension_semantics=("parallel",)),
        cost_estimate=pl.CostEstimate(
            flops=flops,
            transcendentals=B * H * W * hidden,
            bytes_accessed=bytes_accessed),
    )(x_nhwc, w_in, b_in2, w_dw9, b_dw2, w_out, b_out2)

    return jnp.transpose(out_nhwc, (0, 3, 1, 2))


def feed_forward_reference(x, w_in, b_in, w_dw, b_dw, w_out, b_out):
    """Pure-JAX reference mirroring the torch module (same tanh-gelu)."""
    C2 = w_in.shape[1]
    hidden = C2 // 2
    h = jnp.einsum('bchw,cd->bdhw', x, w_in,
                   precision=lax.Precision.HIGHEST) + b_in[None, :, None, None]
    k = jnp.transpose(w_dw, (2, 0, 1))[:, None, :, :]     # (C2, 1, 3, 3) OIHW
    h = lax.conv_general_dilated(
        h, k, window_strides=(1, 1), padding=((1, 1), (1, 1)),
        dimension_numbers=("NCHW", "OIHW", "NCHW"),
        feature_group_count=C2,
        precision=lax.Precision.HIGHEST) + b_dw[None, :, None, None]
    x1, x2 = h[:, :hidden], h[:, hidden:]
    g = _gelu_tanh(x1) * x2
    out = jnp.einsum('bchw,cd->bdhw', g, w_out,
                     precision=lax.Precision.HIGHEST) + b_out[None, :, None, None]
    return out


if __name__ == "__main__":
    key = jax.random.PRNGKey(0)
    B, dim, H, W = 2, 4, 16, 16
    ffn_expansion_factor = 2.0
    hidden = int(dim * ffn_expansion_factor)   # 8
    C2 = 2 * hidden                            # 16

    ks = jax.random.split(key, 7)
    x = jax.random.normal(ks[0], (B, dim, H, W), dtype=jnp.float32)
    w_in = 0.2 * jax.random.normal(ks[1], (dim, C2), dtype=jnp.float32)
    b_in = 0.1 * jax.random.normal(ks[2], (C2,), dtype=jnp.float32)
    w_dw = 0.2 * jax.random.normal(ks[3], (3, 3, C2), dtype=jnp.float32)
    b_dw = 0.1 * jax.random.normal(ks[4], (C2,), dtype=jnp.float32)
    w_out = 0.2 * jax.random.normal(ks[5], (hidden, dim), dtype=jnp.float32)
    b_out = 0.1 * jax.random.normal(ks[6], (dim,), dtype=jnp.float32)

    out = jax.block_until_ready(
        feed_forward(x, w_in, b_in, w_dw, b_dw, w_out, b_out))
    ref = jax.block_until_ready(
        feed_forward_reference(x, w_in, b_in, w_dw, b_dw, w_out, b_out))

    assert out.shape == (B, dim, H, W), out.shape
    assert jnp.allclose(out, ref, atol=2e-3, rtol=2e-3), \
        float(jnp.max(jnp.abs(out - ref)))

    print("KERNEL_OK")
</pallas_src>

<mosaic_0001>
module attributes {stable_mosaic.version = 11 : i64} {
  func.func @ffn_kernel(%arg0: i32, %arg1: memref<1x16x16x4xf32, #tpu.memory_space<vmem>>, %arg2: memref<4x16xf32, #tpu.memory_space<vmem>>, %arg3: memref<1x16xf32, #tpu.memory_space<vmem>>, %arg4: memref<9x16xf32, #tpu.memory_space<vmem>>, %arg5: memref<1x16xf32, #tpu.memory_space<vmem>>, %arg6: memref<8x4xf32, #tpu.memory_space<vmem>>, %arg7: memref<1x4xf32, #tpu.memory_space<vmem>>, %arg8: memref<1x16x16x4xf32, #tpu.memory_space<vmem>>, %arg9: memref<18x18x16xf32, #tpu.memory_space<vmem>>) attributes {dimension_semantics = [#tpu.dimension_semantics<parallel>], iteration_bounds = array<i64: 2>, scalar_prefetch = 0 : i64, scratch_operands = 1 : i64, tpu.core_type = #tpu.core_type<tc>, window_params = [{transform_indices = @transform_0, window_bounds = array<i64: 1, 16, 16, 4>}, {pipeline_mode = #tpu.pipeline_mode<synchronous>, transform_indices = @transform_1, window_bounds = array<i64: 4, 16>}, {pipeline_mode = #tpu.pipeline_mode<synchronous>, transform_indices = @transform_2, window_bounds = array<i64: 1, 16>}, {pipeline_mode = #tpu.pipeline_mode<synchronous>, transform_indices = @transform_3, window_bounds = array<i64: 9, 16>}, {pipeline_mode = #tpu.pipeline_mode<synchronous>, transform_indices = @transform_4, window_bounds = array<i64: 1, 16>}, {pipeline_mode = #tpu.pipeline_mode<synchronous>, transform_indices = @transform_5, window_bounds = array<i64: 8, 4>}, {pipeline_mode = #tpu.pipeline_mode<synchronous>, transform_indices = @transform_6, window_bounds = array<i64: 1, 4>}, {transform_indices = @transform_7, window_bounds = array<i64: 1, 16, 16, 4>}]} {
    %c0 = arith.constant 0 : index
    %c0_0 = arith.constant 0 : index
    %c0_1 = arith.constant 0 : index
    %c0_2 = arith.constant 0 : index
    %0 = vector.load %arg1[%c0, %c0_0, %c0_1, %c0_2] : memref<1x16x16x4xf32, #tpu.memory_space<vmem>>, vector<1x16x16x4xf32>
    %1 = vector.shape_cast %0 : vector<1x16x16x4xf32> to vector<16x16x4xf32>
    %2 = vector.shape_cast %1 : vector<16x16x4xf32> to vector<256x4xf32>
    %c0_3 = arith.constant 0 : index
    %c0_4 = arith.constant 0 : index
    %3 = vector.load %arg2[%c0_3, %c0_4] : memref<4x16xf32, #tpu.memory_space<vmem>>, vector<4x16xf32>
    %cst = arith.constant dense<0.000000e+00> : vector<256x16xf32>
    %4 = tpu.matmul %2, %3, %cst {dimension_numbers = #tpu.dot_dimension_numbers<[1], [0], [0], [1], [0, 0, 1, 1], [], []>} : vector<256x4xf32>, vector<4x16xf32>, vector<256x16xf32> -> vector<256x16xf32>
    %c0_5 = arith.constant 0 : index
    %c0_6 = arith.constant 0 : index
    %5 = vector.load %arg3[%c0_5, %c0_6] : memref<1x16xf32, #tpu.memory_space<vmem>>, vector<1x16xf32>
    %6 = vector.broadcast %5 : vector<1x16xf32> to vector<256x16xf32>
    %7 = arith.addf %4, %6 : vector<256x16xf32>
    %8 = vector.shape_cast %7 : vector<256x16xf32> to vector<16x16x16xf32>
    %cst_7 = arith.constant 0.000000e+00 : f32
    %9 = vector.broadcast %cst_7 : f32 to vector<1x18x16xf32>
    %cst_8 = arith.constant 0.000000e+00 : f32
    %10 = vector.broadcast %cst_8 : f32 to vector<16x1x16xf32>
    %c0_9 = arith.constant 0 : index
    %c0_10 = arith.constant 0 : index
    %c0_11 = arith.constant 0 : index
    %11 = vector.load %arg9[%c0_9, %c0_10, %c0_11] : memref<18x18x16xf32, #tpu.memory_space<vmem>>, vector<1x18x16xf32>
    tpu.vector_store %arg9[%c0_9, %c0_10, %c0_11], %9 {strides = array<i32>} : memref<18x18x16xf32, #tpu.memory_space<vmem>>, vector<1x18x16xf32>,
    %c17 = arith.constant 17 : index
    %c0_12 = arith.constant 0 : index
    %c0_13 = arith.constant 0 : index
    %12 = vector.load %arg9[%c17, %c0_12, %c0_13] : memref<18x18x16xf32, #tpu.memory_space<vmem>>, vector<1x18x16xf32>
    tpu.vector_store %arg9[%c17, %c0_12, %c0_13], %9 {strides = array<i32>} : memref<18x18x16xf32, #tpu.memory_space<vmem>>, vector<1x18x16xf32>,
    %c1 = arith.constant 1 : index
    %c0_14 = arith.constant 0 : index
    %c0_15 = arith.constant 0 : index
    %13 = vector.load %arg9[%c1, %c0_14, %c0_15] : memref<18x18x16xf32, #tpu.memory_space<vmem>>, vector<16x1x16xf32>
    tpu.vector_store %arg9[%c1, %c0_14, %c0_15], %10 {strides = array<i32>} : memref<18x18x16xf32, #tpu.memory_space<vmem>>, vector<16x1x16xf32>,
    %c1_16 = arith.constant 1 : index
    %c17_17 = arith.constant 17 : index
    %c0_18 = arith.constant 0 : index
    %14 = vector.load %arg9[%c1_16, %c17_17, %c0_18] : memref<18x18x16xf32, #tpu.memory_space<vmem>>, vector<16x1x16xf32>
    tpu.vector_store %arg9[%c1_16, %c17_17, %c0_18], %10 {strides = array<i32>} : memref<18x18x16xf32, #tpu.memory_space<vmem>>, vector<16x1x16xf32>,
    %c1_19 = arith.constant 1 : index
    %c1_20 = arith.constant 1 : index
    %c0_21 = arith.constant 0 : index
    %15 = vector.load %arg9[%c1_19, %c1_20, %c0_21] : memref<18x18x16xf32, #tpu.memory_space<vmem>>, vector<16x16x16xf32>
    tpu.vector_store %arg9[%c1_19, %c1_20, %c0_21], %8 {strides = array<i32>} : memref<18x18x16xf32, #tpu.memory_space<vmem>>, vector<16x16x16xf32>,
    %c0_22 = arith.constant 0 : index
    %c0_23 = arith.constant 0 : index
    %16 = vector.load %arg4[%c0_22, %c0_23] : memref<9x16xf32, #tpu.memory_space<vmem>>, vector<9x16xf32>
    %c0_24 = arith.constant 0 : index
    %c0_25 = arith.constant 0 : index
    %17 = vector.load %arg5[%c0_24, %c0_25] : memref<1x16xf32, #tpu.memory_space<vmem>>, vector<1x16xf32>
    %18 = vector.extract_strided_slice %16 {offsets = [4, 0], sizes = [1, 16], strides = [1, 1]} : vector<9x16xf32> to vector<1x16xf32>
    %19 = vector.shape_cast %18 : vector<1x16xf32> to vector<1x1x16xf32>
    %20 = vector.broadcast %19 : vector<1x1x16xf32> to vector<16x16x16xf32>
    %21 = arith.mulf %8, %20 : vector<16x16x16xf32>
    %22 = vector.shape_cast %17 : vector<1x16xf32> to vector<1x1x16xf32>
    %23 = vector.broadcast %22 : vector<1x1x16xf32> to vector<16x16x16xf32>
    %24 = arith.addf %23, %21 : vector<16x16x16xf32>
    %c0_26 = arith.constant 0 : index
    %c0_27 = arith.constant 0 : index
    %c0_28 = arith.constant 0 : index
    %25 = vector.load %arg9[%c0_26, %c0_27, %c0_28] : memref<18x18x16xf32, #tpu.memory_space<vmem>>, vector<16x16x16xf32>
    %26 = vector.extract_strided_slice %16 {offsets = [0, 0], sizes = [1, 16], strides = [1, 1]} : vector<9x16xf32> to vector<1x16xf32>
    %27 = vector.shape_cast %26 : vector<1x16xf32> to vector<1x1x16xf32>
    %28 = vector.broadcast %27 : vector<1x1x16xf32> to vector<16x16x16xf32>
    %29 = arith.mulf %25, %28 : vector<16x16x16xf32>
    %30 = arith.addf %24, %29 : vector<16x16x16xf32>
    %c0_29 = arith.constant 0 : index
    %c1_30 = arith.constant 1 : index
    %c0_31 = arith.constant 0 : index
    %31 = vector.load %arg9[%c0_29, %c1_30, %c0_31] : memref<18x18x16xf32, #tpu.memory_space<vmem>>, vector<16x16x16xf32>
    %32 = vector.extract_strided_slice %16 {offsets = [1, 0], sizes = [1, 16], strides = [1, 1]} : vector<9x16xf32> to vector<1x16xf32>
    %33 = vector.shape_cast %32 : vector<1x16xf32> to vector<1x1x16xf32>
    %34 = vector.broadcast %33 : vector<1x1x16xf32> to vector<16x16x16xf32>
    %35 = arith.mulf %31, %34 : vector<16x16x16xf32>
    %36 = arith.addf %30, %35 : vector<16x16x16xf32>
    %c0_32 = arith.constant 0 : index
    %c2 = arith.constant 2 : index
    %c0_33 = arith.constant 0 : index
    %37 = vector.load %arg9[%c0_32, %c2, %c0_33] : memref<18x18x16xf32, #tpu.memory_space<vmem>>, vector<16x16x16xf32>
    %38 = vector.extract_strided_slice %16 {offsets = [2, 0], sizes = [1, 16], strides = [1, 1]} : vector<9x16xf32> to vector<1x16xf32>
    %39 = vector.shape_cast %38 : vector<1x16xf32> to vector<1x1x16xf32>
    %40 = vector.broadcast %39 : vector<1x1x16xf32> to vector<16x16x16xf32>
    %41 = arith.mulf %37, %40 : vector<16x16x16xf32>
    %42 = arith.addf %36, %41 : vector<16x16x16xf32>
    %c1_34 = arith.constant 1 : index
    %c0_35 = arith.constant 0 : index
    %c0_36 = arith.constant 0 : index
    %43 = vector.load %arg9[%c1_34, %c0_35, %c0_36] : memref<18x18x16xf32, #tpu.memory_space<vmem>>, vector<16x16x16xf32>
    %44 = vector.extract_strided_slice %16 {offsets = [3, 0], sizes = [1, 16], strides = [1, 1]} : vector<9x16xf32> to vector<1x16xf32>
    %45 = vector.shape_cast %44 : vector<1x16xf32> to vector<1x1x16xf32>
    %46 = vector.broadcast %45 : vector<1x1x16xf32> to vector<16x16x16xf32>
    %47 = arith.mulf %43, %46 : vector<16x16x16xf32>
    %48 = arith.addf %42, %47 : vector<16x16x16xf32>
    %c1_37 = arith.constant 1 : index
    %c2_38 = arith.constant 2 : index
    %c0_39 = arith.constant 0 : index
    %49 = vector.load %arg9[%c1_37, %c2_38, %c0_39] : memref<18x18x16xf32, #tpu.memory_space<vmem>>, vector<16x16x16xf32>
    %50 = vector.extract_strided_slice %16 {offsets = [5, 0], sizes = [1, 16], strides = [1, 1]} : vector<9x16xf32> to vector<1x16xf32>
    %51 = vector.shape_cast %50 : vector<1x16xf32> to vector<1x1x16xf32>
    %52 = vector.broadcast %51 : vector<1x1x16xf32> to vector<16x16x16xf32>
    %53 = arith.mulf %49, %52 : vector<16x16x16xf32>
    %54 = arith.addf %48, %53 : vector<16x16x16xf32>
    %c2_40 = arith.constant 2 : index
    %c0_41 = arith.constant 0 : index
    %c0_42 = arith.constant 0 : index
    %55 = vector.load %arg9[%c2_40, %c0_41, %c0_42] : memref<18x18x16xf32, #tpu.memory_space<vmem>>, vector<16x16x16xf32>
    %56 = vector.extract_strided_slice %16 {offsets = [6, 0], sizes = [1, 16], strides = [1, 1]} : vector<9x16xf32> to vector<1x16xf32>
    %57 = vector.shape_cast %56 : vector<1x16xf32> to vector<1x1x16xf32>
    %58 = vector.broadcast %57 : vector<1x1x16xf32> to vector<16x16x16xf32>
    %59 = arith.mulf %55, %58 : vector<16x16x16xf32>
    %60 = arith.addf %54, %59 : vector<16x16x16xf32>
    %c2_43 = arith.constant 2 : index
    %c1_44 = arith.constant 1 : index
    %c0_45 = arith.constant 0 : index
    %61 = vector.load %arg9[%c2_43, %c1_44, %c0_45] : memref<18x18x16xf32, #tpu.memory_space<vmem>>, vector<16x16x16xf32>
    %62 = vector.extract_strided_slice %16 {offsets = [7, 0], sizes = [1, 16], strides = [1, 1]} : vector<9x16xf32> to vector<1x16xf32>
    %63 = vector.shape_cast %62 : vector<1x16xf32> to vector<1x1x16xf32>
    %64 = vector.broadcast %63 : vector<1x1x16xf32> to vector<16x16x16xf32>
    %65 = arith.mulf %61, %64 : vector<16x16x16xf32>
    %66 = arith.addf %60, %65 : vector<16x16x16xf32>
    %c2_46 = arith.constant 2 : index
    %c2_47 = arith.constant 2 : index
    %c0_48 = arith.constant 0 : index
    %67 = vector.load %arg9[%c2_46, %c2_47, %c0_48] : memref<18x18x16xf32, #tpu.memory_space<vmem>>, vector<16x16x16xf32>
    %68 = vector.extract_strided_slice %16 {offsets = [8, 0], sizes = [1, 16], strides = [1, 1]} : vector<9x16xf32> to vector<1x16xf32>
    %69 = vector.shape_cast %68 : vector<1x16xf32> to vector<1x1x16xf32>
    %70 = vector.broadcast %69 : vector<1x1x16xf32> to vector<16x16x16xf32>
    %71 = arith.mulf %67, %70 : vector<16x16x16xf32>
    %72 = arith.addf %66, %71 : vector<16x16x16xf32>
    %73 = vector.extract_strided_slice %72 {offsets = [0, 0, 0], sizes = [16, 16, 8], strides = [1, 1, 1]} : vector<16x16x16xf32> to vector<16x16x8xf32>
    %cst_49 = arith.constant 5.000000e-01 : f32
    %74 = vector.broadcast %cst_49 : f32 to vector<16x16x8xf32>
    %75 = arith.mulf %74, %73 : vector<16x16x8xf32>
    %cst_50 = arith.constant 4.471500e-02 : f32
    %76 = vector.broadcast %cst_50 : f32 to vector<16x16x8xf32>
    %77 = arith.mulf %76, %73 : vector<16x16x8xf32>
    %78 = arith.mulf %77, %73 : vector<16x16x8xf32>
    %79 = arith.mulf %78, %73 : vector<16x16x8xf32>
    %80 = arith.addf %73, %79 : vector<16x16x8xf32>
    %cst_51 = arith.constant 0.797884583 : f32
    %81 = vector.broadcast %cst_51 : f32 to vector<16x16x8xf32>
    %82 = arith.mulf %81, %80 : vector<16x16x8xf32>
    %83 = math.tanh %82 : vector<16x16x8xf32>
    %cst_52 = arith.constant 1.000000e+00 : f32
    %84 = vector.broadcast %cst_52 : f32 to vector<16x16x8xf32>
    %85 = arith.addf %84, %83 : vector<16x16x8xf32>
    %86 = arith.mulf %75, %85 : vector<16x16x8xf32>
    %87 = vector.extract_strided_slice %72 {offsets = [0, 0, 8], sizes = [16, 16, 8], strides = [1, 1, 1]} : vector<16x16x16xf32> to vector<16x16x8xf32>
    %88 = arith.mulf %86, %87 : vector<16x16x8xf32>
    %89 = vector.shape_cast %88 : vector<16x16x8xf32> to vector<256x8xf32>
    %c0_53 = arith.constant 0 : index
    %c0_54 = arith.constant 0 : index
    %90 = vector.load %arg6[%c0_53, %c0_54] : memref<8x4xf32, #tpu.memory_space<vmem>>, vector<8x4xf32>
    %cst_55 = arith.constant dense<0.000000e+00> : vector<256x4xf32>
    %91 = tpu.matmul %89, %90, %cst_55 {dimension_numbers = #tpu.dot_dimension_numbers<[1], [0], [0], [1], [0, 0, 1, 1], [], []>} : vector<256x8xf32>, vector<8x4xf32>, vector<256x4xf32> -> vector<256x4xf32>
    %c0_56 = arith.constant 0 : index
    %c0_57 = arith.constant 0 : index
    %92 = vector.load %arg7[%c0_56, %c0_57] : memref<1x4xf32, #tpu.memory_space<vmem>>, vector<1x4xf32>
    %93 = vector.broadcast %92 : vector<1x4xf32> to vector<256x4xf32>
    %94 = arith.addf %91, %93 : vector<256x4xf32>
    %95 = vector.shape_cast %94 : vector<256x4xf32> to vector<16x16x4xf32>
    %c0_58 = arith.constant 0 : index
    %c0_59 = arith.constant 0 : index
    %c0_60 = arith.constant 0 : index
    %c0_61 = arith.constant 0 : index
    %96 = vector.load %arg8[%c0_58, %c0_59, %c0_60, %c0_61] : memref<1x16x16x4xf32, #tpu.memory_space<vmem>>, vector<1x16x16x4xf32>
    %97 = vector.shape_cast %96 : vector<1x16x16x4xf32> to vector<16x16x4xf32>
    %98 = vector.shape_cast %95 : vector<16x16x4xf32> to vector<1x16x16x4xf32>
    tpu.vector_store %arg8[%c0_58, %c0_59, %c0_60, %c0_61], %98 {strides = array<i32>} : memref<1x16x16x4xf32, #tpu.memory_space<vmem>>, vector<1x16x16x4xf32>,
    return
  }
  func.func @transform_0(%arg0: i32) -> (i32, i32, i32, i32) {
    %c0_i32 = arith.constant 0 : i32
    %c0_i32_0 = arith.constant 0 : i32
    %c0_i32_1 = arith.constant 0 : i32
    %c0_i32_2 = arith.constant 0 : i32
    return %arg0, %c0_i32, %c0_i32_0, %c0_i32_1 : i32, i32, i32, i32
  }
  func.func @transform_1(%arg0: i32) -> (i32, i32) {
    %c0_i32 = arith.constant 0 : i32
    %c0_i32_0 = arith.constant 0 : i32
    %c0_i32_1 = arith.constant 0 : i32
    return %c0_i32, %c0_i32_0 : i32, i32
  }
  func.func @transform_2(%arg0: i32) -> (i32, i32) {
    %c0_i32 = arith.constant 0 : i32
    %c0_i32_0 = arith.constant 0 : i32
    %c0_i32_1 = arith.constant 0 : i32
    return %c0_i32, %c0_i32_0 : i32, i32
  }
  func.func @transform_3(%arg0: i32) -> (i32, i32) {
    %c0_i32 = arith.constant 0 : i32
    %c0_i32_0 = arith.constant 0 : i32
    %c0_i32_1 = arith.constant 0 : i32
    return %c0_i32, %c0_i32_0 : i32, i32
  }
  func.func @transform_4(%arg0: i32) -> (i32, i32) {
    %c0_i32 = arith.constant 0 : i32
    %c0_i32_0 = arith.constant 0 : i32
    %c0_i32_1 = arith.constant 0 : i32
    return %c0_i32, %c0_i32_0 : i32, i32
  }
  func.func @transform_5(%arg0: i32) -> (i32, i32) {
    %c0_i32 = arith.constant 0 : i32
    %c0_i32_0 = arith.constant 0 : i32
    %c0_i32_1 = arith.constant 0 : i32
    return %c0_i32, %c0_i32_0 : i32, i32
  }
  func.func @transform_6(%arg0: i32) -> (i32, i32) {
    %c0_i32 = arith.constant 0 : i32
    %c0_i32_0 = arith.constant 0 : i32
    %c0_i32_1 = arith.constant 0 : i32
    return %c0_i32, %c0_i32_0 : i32, i32
  }
  func.func @transform_7(%arg0: i32) -> (i32, i32, i32, i32) {
    %c0_i32 = arith.constant 0 : i32
    %c0_i32_0 = arith.constant 0 : i32
    %c0_i32_1 = arith.constant 0 : i32
    %c0_i32_2 = arith.constant 0 : i32
    return %arg0, %c0_i32, %c0_i32_0, %c0_i32_1 : i32, i32, i32, i32
  }
}

</mosaic_0001>

<llo_original>
// kernel: tpu_custom_call.1
$region0: #{tpu_custom_call.1}
  #allocation0 [shape = 'u32[]', space=smem, size = 0x4, offset = 0x4, fixed_abs, tag = 'smem constant byte address 0x4 - core index']
  #allocation1 [shape = 'u32[144,128]{1,0:T(1,128)}', space=vmem, size = 0x12000, scoped, tag = 'internal scratch']
  #allocation2 [shape = 'f32[18,18,16]{2,1,0:T(8,128)}', space=vmem, size = 0x36000, scoped, tag = 'scratch operand']
  %s0 = inlined_call_operand.vmem [shape: f32[2,16,16,4], index: 0, kind: input, shape index: {}]
  %s1 = inlined_call_operand.vmem [shape: f32[4,16], index: 1, kind: input, shape index: {}]
  %s2 = inlined_call_operand.vmem [shape: f32[1,16], index: 2, kind: input, shape index: {}]
  %s3 = inlined_call_operand.vmem [shape: f32[9,16], index: 3, kind: input, shape index: {}]
  %s4 = inlined_call_operand.vmem [shape: f32[1,16], index: 4, kind: input, shape index: {}]
  %s5 = inlined_call_operand.vmem [shape: f32[8,4], index: 5, kind: input, shape index: {}]
  %s6 = inlined_call_operand.vmem [shape: f32[1,4], index: 6, kind: input, shape index: {}]
  %s7 = inlined_call_operand.vmem [shape: f32[2,16,16,4], index: 7, kind: output, shape index: {}]
  %s8 = sld [smem:[#allocation0]]
  $region61: #{tpu_custom_call.1} parent=0
    _
  %s10 = ssub.s32 1, %s8
  %s11 = scalar_select 0, %s10, %s8
  loop: start=0, step=1, limit=4
  $region2: #{tpu_custom_call.1} parent=0 // loop_pre_header
    _
  $region3: #{tpu_custom_call.1} parent=0 // loop_header
    %s13 = sphi 0, %s17
    %p14 = scmp.ge.s32.totalorder %s13, 4
    %s23 = sphi 0, %s25
    %s26 = sphi 0, %s23
    %s27 = sphi 0, %s26
    %s43 = sphi 0, %s27
    %s47 = sphi 0, %s47
    %s49 = sphi 0, %s47
    %s50 = sphi 0, %s49
    %s64 = sphi 0, %s50
    %s68 = sphi 0, %s68
    %s70 = sphi 0, %s68
    %s71 = sphi 0, %s70
    %s85 = sphi 0, %s71
    %s89 = sphi 0, %s89
    %s91 = sphi 0, %s89
    %s92 = sphi 0, %s91
    %s106 = sphi 0, %s92
    %s110 = sphi 0, %s110
    %s112 = sphi 0, %s110
    %s113 = sphi 0, %s112
    %s127 = sphi 0, %s113
    %s131 = sphi 0, %s131
    %s133 = sphi 0, %s131
    %s134 = sphi 0, %s133
    %s148 = sphi 0, %s134
    %s152 = sphi 0, %s152
    %s154 = sphi 0, %s152
    %s155 = sphi 0, %s154
    %s169 = sphi 0, %s155
    %s175 = sphi 0, %s177
    %s178 = sphi 0, %s175
    %s179 = sphi 0, %s178
    %s195 = sphi 0, %s179
  $region4: #{tpu_custom_call.1} parent=0 // loop_header_branch
    %16 = sbr.rel (%p14) target = $region8
  $region5: #{tpu_custom_call.1} parent=0 // loop_body
    %s18 = ssub.s32 %s13, 1
    %s19 = ssub.s32 %s13, 2
    %s20 = sadd.s32 %s13, 1
    %s21 = ssub.s32 %s13, %s20
    %p22 = scmp.eq.s32.totalorder %s21, 0
    %s24 = sadd.s32 %s23, 1
    %s25 = scalar_select %p22, %s23, %s24
    %p28 = pneg %p22
    %p29 = scmp.eq.s32.totalorder %s13, 1
    %p30 = por %p28, %p29
    %p31 = scmp.ne.s32.totalorder %s23, %s26
    %p32 = scmp.eq.s32.totalorder %s13, 0
    %p33 = por %p31, %p32
    %p34 = scmp.ne.s32.totalorder %s23, %s26
    %p35 = scmp.eq.s32.totalorder %s18, 1
    %p36 = por %p34, %p35
    %p37 = scmp.ne.s32.totalorder %s26, %s27
    %p38 = scmp.eq.s32.totalorder %s18, 0
    %p39 = por %p37, %p38
    %p40 = scmp.ne.s32.totalorder %s26, %s27
    %p41 = scmp.eq.s32.totalorder %s19, 1
    %p42 = por %p40, %p41
    %p44 = scmp.ne.s32.totalorder %s27, %s43
    %p45 = scmp.eq.s32.totalorder %s19, 0
    %p46 = por %p44, %p45
    %s48 = sadd.s32 %s47, 1
    %p51 = scmp.eq.s32.totalorder %s13, 1
    %p52 = scmp.ne.s32.totalorder %s47, %s49
    %p53 = scmp.eq.s32.totalorder %s13, 0
    %p54 = por %p52, %p53
    %p55 = scmp.ne.s32.totalorder %s47, %s49
    %p56 = scmp.eq.s32.totalorder %s18, 1
    %p57 = por %p55, %p56
    %p58 = scmp.ne.s32.totalorder %s49, %s50
    %p59 = scmp.eq.s32.totalorder %s18, 0
    %p60 = por %p58, %p59
    %p61 = scmp.ne.s32.totalorder %s49, %s50
    %p62 = scmp.eq.s32.totalorder %s19, 1
    %p63 = por %p61, %p62
    %p65 = scmp.ne.s32.totalorder %s50, %s64
    %p66 = scmp.eq.s32.totalorder %s19, 0
    %p67 = por %p65, %p66
    %s69 = sadd.s32 %s68, 1
    %p72 = scmp.eq.s32.totalorder %s13, 1
    %p73 = scmp.ne.s32.totalorder %s68, %s70
    %p74 = scmp.eq.s32.totalorder %s13, 0
    %p75 = por %p73, %p74
    %p76 = scmp.ne.s32.totalorder %s68, %s70
    %p77 = scmp.eq.s32.totalorder %s18, 1
    %p78 = por %p76, %p77
    %p79 = scmp.ne.s32.totalorder %s70, %s71
    %p80 = scmp.eq.s32.totalorder %s18, 0
    %p81 = por %p79, %p80
    %p82 = scmp.ne.s32.totalorder %s70, %s71
    %p83 = scmp.eq.s32.totalorder %s19, 1
    %p84 = por %p82, %p83
    %p86 = scmp.ne.s32.totalorder %s71, %s85
    %p87 = scmp.eq.s32.totalorder %s19, 0
    %p88 = por %p86, %p87
    %s90 = sadd.s32 %s89, 1
    %p93 = scmp.eq.s32.totalorder %s13, 1
    %p94 = scmp.ne.s32.totalorder %s89, %s91
    %p95 = scmp.eq.s32.totalorder %s13, 0
    %p96 = por %p94, %p95
    %p97 = scmp.ne.s32.totalorder %s89, %s91
    %p98 = scmp.eq.s32.totalorder %s18, 1
    %p99 = por %p97, %p98
    %p100 = scmp.ne.s32.totalorder %s91, %s92
    %p101 = scmp.eq.s32.totalorder %s18, 0
    %p102 = por %p100, %p101
    %p103 = scmp.ne.s32.totalorder %s91, %s92
    %p104 = scmp.eq.s32.totalorder %s19, 1
    %p105 = por %p103, %p104
    %p107 = scmp.ne.s32.totalorder %s92, %s106
    %p108 = scmp.eq.s32.totalorder %s19, 0
    %p109 = por %p107, %p108
    %s111 = sadd.s32 %s110, 1
    %p114 = scmp.eq.s32.totalorder %s13, 1
    %p115 = scmp.ne.s32.totalorder %s110, %s112
    %p116 = scmp.eq.s32.totalorder %s13, 0
    %p117 = por %p115, %p116
    %p118 = scmp.ne.s32.totalorder %s110, %s112
    %p119 = scmp.eq.s32.totalorder %s18, 1
    %p120 = por %p118, %p119
    %p121 = scmp.ne.s32.totalorder %s112, %s113
    %p122 = scmp.eq.s32.totalorder %s18, 0
    %p123 = por %p121, %p122
    %p124 = scmp.ne.s32.totalorder %s112, %s113
    %p125 = scmp.eq.s32.totalorder %s19, 1
    %p126 = por %p124, %p125
    %p128 = scmp.ne.s32.totalorder %s113, %s127
    %p129 = scmp.eq.s32.totalorder %s19, 0
    %p130 = por %p128, %p129
    %s132 = sadd.s32 %s131, 1
    %p135 = scmp.eq.s32.totalorder %s13, 1
    %p136 = scmp.ne.s32.totalorder %s131, %s133
    %p137 = scmp.eq.s32.totalorder %s13, 0
    %p138 = por %p136, %p137
    %p139 = scmp.ne.s32.totalorder %s131, %s133
    %p140 = scmp.eq.s32.totalorder %s18, 1
    %p141 = por %p139, %p140
    %p142 = scmp.ne.s32.totalorder %s133, %s134
    %p143 = scmp.eq.s32.totalorder %s18, 0
    %p144 = por %p142, %p143
    %p145 = scmp.ne.s32.totalorder %s133, %s134
    %p146 = scmp.eq.s32.totalorder %s19, 1
    %p147 = por %p145, %p146
    %p149 = scmp.ne.s32.totalorder %s134, %s148
    %p150 = scmp.eq.s32.totalorder %s19, 0
    %p151 = por %p149, %p150
    %s153 = sadd.s32 %s152, 1
    %p156 = scmp.eq.s32.totalorder %s13, 1
    %p157 = scmp.ne.s32.totalorder %s152, %s154
    %p158 = scmp.eq.s32.totalorder %s13, 0
    %p159 = por %p157, %p158
    %p160 = scmp.ne.s32.totalorder %s152, %s154
    %p161 = scmp.eq.s32.totalorder %s18, 1
    %p162 = por %p160, %p161
    %p163 = scmp.ne.s32.totalorder %s154, %s155
    %p164 = scmp.eq.s32.totalorder %s18, 0
    %p165 = por %p163, %p164
    %p166 = scmp.ne.s32.totalorder %s154, %s155
    %p167 = scmp.eq.s32.totalorder %s19, 1
    %p168 = por %p166, %p167
    %p170 = scmp.ne.s32.totalorder %s155, %s169
    %p171 = scmp.eq.s32.totalorder %s19, 0
    %p172 = por %p170, %p171
    %s173 = ssub.s32 %s13, %s20
    %p174 = scmp.eq.s32.totalorder %s173, 0
    %s176 = sadd.s32 %s175, 1
    %s177 = scalar_select %p174, %s175, %s176
    %p180 = pneg %p174
    %p181 = scmp.eq.s32.totalorder %s13, 1
    %p182 = por %p180, %p181
    %p183 = scmp.ne.s32.totalorder %s175, %s178
    %p184 = scmp.eq.s32.totalorder %s13, 0
    %p185 = por %p183, %p184
    %p186 = scmp.ne.s32.totalorder %s175, %s178
    %p187 = scmp.eq.s32.totalorder %s18, 1
    %p188 = por %p186, %p187
    %p189 = scmp.ne.s32.totalorder %s178, %s179
    %p190 = scmp.eq.s32.totalorder %s18, 0
    %p191 = por %p189, %p190
    %p192 = scmp.ne.s32.totalorder %s178, %s179
    %p193 = scmp.eq.s32.totalorder %s19, 1
    %p194 = por %p192, %p193
    %p196 = scmp.ne.s32.totalorder %s179, %s195
    %p197 = scmp.eq.s32.totalorder %s19, 0
    %p198 = por %p196, %p197
    %p199 = scmp.le.s32.totalorder 1, %s13
    %p200 = scmp.lt.s32.totalorder %s13, 3
    %p201 = pnand %p199, %p200
    %p202 = pneg %p201
    // Predicated region
    $region9: #{tpu_custom_call.1} parent=5 // pred_check
      _
    $region10: #{tpu_custom_call.1} parent=5 // pred_check_branch
      %204 = sbr.rel (%p201) target = $region12
    $region11: #{tpu_custom_call.1} parent=5 // pred_region
      %s205 = ssub.s32 %s13, 1
      // Predicated region
      $region13: #{tpu_custom_call.1} parent=11 // pred_check
        %p206 = pneg %p60
      $region14: #{tpu_custom_call.1} parent=11 // pred_check_branch
        %208 = sbr.rel (%p206) target = $region16
      $region15: #{tpu_custom_call.1} parent=11 // pred_region
        _
      $region16: #{tpu_custom_call.1} parent=11 // pred_fallthru
        _
      // Predicated region
      $region17: #{tpu_custom_call.1} parent=11 // pred_check
        %p209 = pneg %p81
      $region18: #{tpu_custom_call.1} parent=11 // pred_check_branch
        %211 = sbr.rel (%p209) target = $region20
      $region19: #{tpu_custom_call.1} parent=11 // pred_region
        _
      $region20: #{tpu_custom_call.1} parent=11 // pred_fallthru
        _
      // Predicated region
      $region21: #{tpu_custom_call.1} parent=11 // pred_check
        %p212 = pneg %p102
      $region22: #{tpu_custom_call.1} parent=11 // pred_check_branch
        %214 = sbr.rel (%p212) target = $region24
      $region23: #{tpu_custom_call.1} parent=11 // pred_region
        _
      $region24: #{tpu_custom_call.1} parent=11 // pred_fallthru
        _
      // Predicated region
      $region25: #{tpu_custom_call.1} parent=11 // pred_check
        %p215 = pneg %p123
      $region26: #{tpu_custom_call.1} parent=11 // pred_check_branch
        %217 = sbr.rel (%p215) target = $region28
      $region27: #{tpu_custom_call.1} parent=11 // pred_region
        _
      $region28: #{tpu_custom_call.1} parent=11 // pred_fallthru
        _
      // Predicated region
      $region29: #{tpu_custom_call.1} parent=11 // pred_check
        %p218 = pneg %p144
      $region30: #{tpu_custom_call.1} parent=11 // pred_check_branch
        %220 = sbr.rel (%p218) target = $region32
      $region31: #{tpu_custom_call.1} parent=11 // pred_region
        _
      $region32: #{tpu_custom_call.1} parent=11 // pred_fallthru
        _
      // Predicated region
      $region33: #{tpu_custom_call.1} parent=11 // pred_check
        %p221 = pneg %p165
      $region34: #{tpu_custom_call.1} parent=11 // pred_check_branch
        %223 = sbr.rel (%p221) target = $region36
      $region35: #{tpu_custom_call.1} parent=11 // pred_region
        _
      $region36: #{tpu_custom_call.1} parent=11 // pred_fallthru
        _
    $region12: #{tpu_custom_call.1} parent=5 // pred_fallthru
      _
    %p224 = scmp.lt.s32.totalorder %s13, 2
    // Predicated region
    $region37: #{tpu_custom_call.1} parent=5 // pred_check
      %p225 = pneg %p224
    $region38: #{tpu_custom_call.1} parent=5 // pred_check_branch
      %227 = sbr.rel (%p225) target = $region40
    $region39: #{tpu_custom_call.1} parent=5 // pred_region
      // Predicated region
      $region41: #{tpu_custom_call.1} parent=39 // pred_check
        %p228 = pneg %p33
      $region42: #{tpu_custom_call.1} parent=39 // pred_check_branch
        %230 = sbr.rel (%p228) target = $region44
      $region43: #{tpu_custom_call.1} parent=39 // pred_region
        %p231 = scmp.lt.s32.totalorder %s13, 1
        %s232 = scalar_select %p231, %s13, 1
        %s233 = smul.addr %s232, 32
        %s234 = smul.addr %s233, 8
        %s235 = scalar_lea.vmem %s0, %s234
      $region44: #{tpu_custom_call.1} parent=39 // pred_fallthru
        _
    $region40: #{tpu_custom_call.1} parent=5 // pred_fallthru
      _
    %p236 = scmp.le.s32.totalorder 1, %s13
    %p237 = scmp.lt.s32.totalorder %s13, 3
    %p238 = pnand %p236, %p237
    %p239 = pneg %p238
    // Predicated region
    $region45: #{tpu_custom_call.1} parent=5 // pred_check
      _
    $region46: #{tpu_custom_call.1} parent=5 // pred_check_branch
      %241 = sbr.rel (%p238) target = $region48
    $region47: #{tpu_custom_call.1} parent=5 // pred_region
      %s242 = ssub.s32 %s13, 1
      %p243 = scmp.lt.s32.totalorder %s18, 1
      %s244 = scalar_select %p243, %s18, 1
      %s245 = smul.addr %s244, 32
      %s246 = smul.addr %s245, 8
      %s247 = scalar_lea.vmem %s0, %s246
      %p248 = pneg %p39
      %p249 = pneg %p36
      %p250 = pneg %p60
      %p251 = pneg %p57
      %p252 = pneg %p81
      %p253 = pneg %p78
      %p254 = pneg %p102
      %p255 = pneg %p99
      %p256 = pneg %p123
      %p257 = pneg %p120
      %p258 = pneg %p144
      %p259 = pneg %p141
      %p260 = pneg %p165
      %p261 = pneg %p162
      %p262 = pneg %p191
      %p263 = pneg %p188
      %p264 = scmp.lt.s32.totalorder %s18, 1
      %s265 = scalar_select %p264, %s18, 1
      %s266 = smul.addr %s265, 32
      %s267 = smul.addr %s266, 8
      %s268 = scalar_lea.vmem %s7, %s267
      %p269 = scmp.lt.s32.totalorder %s18, 1
      %s270 = scalar_select %p269, %s18, 1
      %s271 = smul.addr %s270, 32
      %s272 = smul.addr %s271, 8
      %s273 = scalar_lea.vmem %s0, %s272
      %p274 = scmp.lt.s32.totalorder %s18, 1
      %s275 = scalar_select %p274, %s18, 1
      %s276 = smul.addr %s275, 32
      %s277 = smul.addr %s276, 8
      %s278 = scalar_lea.vmem %s7, %s277
      %v279 = vld [vmem:[%s273] sm:$0xff]
      %v280 = vld [vmem:[%s273 + $0x8] sm:$0xff]
      %v281 = vld [vmem:[%s273 + $0x10] sm:$0xff]
      %v282 = vld [vmem:[%s273 + $0x18] sm:$0xff]
      %v283 = vld [vmem:[%s273 + $0x20] sm:$0xff]
      %v284 = vld [vmem:[%s273 + $0x28] sm:$0xff]
      %v285 = vld [vmem:[%s273 + $0x30] sm:$0xff]
      %v286 = vld [vmem:[%s273 + $0x38] sm:$0xff]
      %v287 = vld [vmem:[%s273 + $0x40] sm:$0xff]
      %v288 = vld [vmem:[%s273 + $0x48] sm:$0xff]
      %v289 = vld [vmem:[%s273 + $0x50] sm:$0xff]
      %v290 = vld [vmem:[%s273 + $0x58] sm:$0xff]
      %v291 = vld [vmem:[%s273 + $0x60] sm:$0xff]
      %v292 = vld [vmem:[%s273 + $0x68] sm:$0xff]
      %v293 = vld [vmem:[%s273 + $0x70] sm:$0xff]
      %v294 = vld [vmem:[%s273 + $0x78] sm:$0xff]
      %v295 = vld [vmem:[%s273 + $0x80] sm:$0xff]
      %v296 = vld [vmem:[%s273 + $0x88] sm:$0xff]
      %v297 = vld [vmem:[%s273 + $0x90] sm:$0xff]
      %v298 = vld [vmem:[%s273 + $0x98] sm:$0xff]
      %v299 = vld [vmem:[%s273 + $0xa0] sm:$0xff]
      %v300 = vld [vmem:[%s273 + $0xa8] sm:$0xff]
      %v301 = vld [vmem:[%s273 + $0xb0] sm:$0xff]
      %v302 = vld [vmem:[%s273 + $0xb8] sm:$0xff]
      %v303 = vld [vmem:[%s273 + $0xc0] sm:$0xff]
      %v304 = vld [vmem:[%s273 + $0xc8] sm:$0xff]
      %v305 = vld [vmem:[%s273 + $0xd0] sm:$0xff]
      %v306 = vld [vmem:[%s273 + $0xd8] sm:$0xff]
      %v307 = vld [vmem:[%s273 + $0xe0] sm:$0xff]
      %v308 = vld [vmem:[%s273 + $0xe8] sm:$0xff]
      %v309 = vld [vmem:[%s273 + $0xf0] sm:$0xff]
      %v310 = vld [vmem:[%s273 + $0xf8] sm:$0xff]
      %v311 = vld [vmem:[%s1] sm:$0xf]
      %v312 = vld [vmem:[%s2] sm:$0x1]
      %v314 = vlaneseq
      %v315 = vshrl.u32 %v314, 7
      %v316 = vsub.s32 0, %v315
      %v317 = vrot.slane %v312, %v316
      %vm319 = vcmask 31744
      %v321 = vsel %vm319, %v279, 0
      %v324 = vsel %vm319, %v280, 0
      %v327 = vsel %vm319, %v281, 0
      %v330 = vsel %vm319, %v282, 0
      %v333 = vsel %vm319, %v283, 0
      %v336 = vsel %vm319, %v284, 0
      %v339 = vsel %vm319, %v285, 0
      %v342 = vsel %vm319, %v286, 0
      %v345 = vsel %vm319, %v287, 0
      %v348 = vsel %vm319, %v288, 0
      %v351 = vsel %vm319, %v289, 0
      %v354 = vsel %vm319, %v290, 0
      %v357 = vsel %vm319, %v291, 0
      %v360 = vsel %vm319, %v292, 0
      %v363 = vsel %vm319, %v293, 0
      %v366 = vsel %vm319, %v294, 0
      %v369 = vsel %vm319, %v295, 0
      %v372 = vsel %vm319, %v296, 0
      %v375 = vsel %vm319, %v297, 0
      %v378 = vsel %vm319, %v298, 0
      %v381 = vsel %vm319, %v299, 0
      %v384 = vsel %vm319, %v300, 0
      %v387 = vsel %vm319, %v301, 0
      %v390 = vsel %vm319, %v302, 0
      %v393 = vsel %vm319, %v303, 0
      %v396 = vsel %vm319, %v304, 0
      %v399 = vsel %vm319, %v305, 0
      %v402 = vsel %vm319, %v306, 0
      %v405 = vsel %vm319, %v307, 0
      %v408 = vsel %vm319, %v308, 0
      %v411 = vsel %vm319, %v309, 0
      %v414 = vsel %vm319, %v310, 0
      %vm416 = vcmask 1043456
      %v418 = vsel %vm416, %v311, 0
      %420 = vmatprep.subr.mxu0 0.0
      %421 = vmatpush1.msra.mxu0 %v418
      %422 = vmatprep.subr.mxu0 0.0
      %423 = vmatpush1.msra.mxu0 0.0
      %424 = vmatprep.subr.mxu0 0.0
      %425 = vmatpush1.msra.mxu0 0.0
      %426 = vmatprep.subr.mxu0 0.0
      %427 = vmatpush1.msra.mxu0 0.0
      %428 = vmatprep.subr.mxu0 0.0
      %429 = vmatpush1.msra.mxu0 0.0
      %430 = vmatprep.subr.mxu0 0.0
      %431 = vmatpush1.msra.mxu0 0.0
      %432 = vmatprep.subr.mxu0 0.0
      %433 = vmatpush1.msra.mxu0 0.0
      %434 = vmatprep.subr.mxu0 0.0
      %435 = vmatpush1.msra.mxu0 0.0
      %436 = vmatprep.subr.mxu0 0.0
      %437 = vmatpush1.msra.mxu0 0.0
      %438 = vmatprep.subr.mxu0 0.0
      %439 = vmatpush1.msra.mxu0 0.0
      %440 = vmatprep.subr.mxu0 0.0
      %441 = vmatpush1.msra.mxu0 0.0
      %442 = vmatprep.subr.mxu0 0.0
      %443 = vmatpush1.msra.mxu0 0.0
      %444 = vmatprep.subr.mxu0 0.0
      %445 = vmatpush1.msra.mxu0 0.0
      %446 = vmatprep.subr.mxu0 0.0
      %447 = vmatpush1.msra.mxu0 0.0
      %448 = vmatprep.subr.mxu0 0.0
      %449 = vmatpush1.msra.mxu0 0.0
      %450 = vmatprep.subr.mxu0 0.0
      %451 = vmatpush1.msra.mxu0 0.0
      %452 = vmatprep.subr.mxu0 0.0
      %453 = vmatpush1.msra.mxu0 0.0
      %454 = vmatprep.subr.mxu0 0.0
      %455 = vmatpush1.msra.mxu0 0.0
      %456 = vmatprep.subr.mxu0 0.0
      %457 = vmatpush1.msra.mxu0 0.0
      %458 = vmatprep.subr.mxu0 0.0
      %459 = vmatpush1.msra.mxu0 0.0
      %460 = vmatprep.subr.mxu0 0.0
      %461 = vmatpush1.msra.mxu0 0.0
      %462 = vmatprep.subr.mxu0 0.0
      %463 = vmatpush1.msra.mxu0 0.0
      %464 = vmatprep.subr.mxu0 0.0
      %465 = vmatpush1.msra.mxu0 0.0
      %466 = vmatprep.subr.mxu0 0.0
      %467 = vmatpush1.msra.mxu0 0.0
      %468 = vmatprep.subr.mxu0 0.0
      %469 = vmatpush1.msra.mxu0 0.0
      %470 = vmatprep.subr.mxu0 0.0
      %471 = vmatpush1.msra.mxu0 0.0
      %472 = vmatprep.subr.mxu0 0.0
      %473 = vmatpush1.msra.mxu0 0.0
      %474 = vmatprep.subr.mxu0 0.0
      %475 = vmatpush1.msra.mxu0 0.0
      %476 = vmatprep.subr.mxu0 0.0
      %477 = vmatpush1.msra.mxu0 0.0
      %478 = vmatprep.subr.mxu0 0.0
      %479 = vmatpush1.msra.mxu0 0.0
      %480 = vmatprep.subr.mxu0 0.0
      %481 = vmatpush1.msra.mxu0 0.0
      %482 = vmatprep.subr.mxu0 0.0
      %483 = vmatpush1.msra.mxu0 0.0
      %484 = vmatprep.mubr.f32.mxu0 0.0
      %485 = vmatmul.mubr.f32.gmra.mrb[0].mxu0 %v321
      %v486 = vpop.f32.mrb[0].mxu0
      %v487 = vadd.f32 %v317, %v486
      %v488 = vpop.f32.mrb[0].mxu0
      %489 = vmatprep.mubr.f32.mxu0 0.0
      %490 = vmatmul.mubr.f32.gmra.mrb[0].mxu0 %v324
      %v491 = vpop.f32.mrb[0].mxu0
      %v492 = vadd.f32 %v317, %v491
      %v493 = vpop.f32.mrb[0].mxu0
      %494 = vmatprep.mubr.f32.mxu0 0.0
      %495 = vmatmul.mubr.f32.gmra.mrb[0].mxu0 %v327
      %v496 = vpop.f32.mrb[0].mxu0
      %v497 = vadd.f32 %v317, %v496
      %v498 = vpop.f32.mrb[0].mxu0
      %499 = vmatprep.mubr.f32.mxu0 0.0
      %500 = vmatmul.mubr.f32.gmra.mrb[0].mxu0 %v330
      %v501 = vpop.f32.mrb[0].mxu0
      %v502 = vadd.f32 %v317, %v501
      %v503 = vpop.f32.mrb[0].mxu0
      %504 = vmatprep.mubr.f32.mxu0 0.0
      %505 = vmatmul.mubr.f32.gmra.mrb[0].mxu0 %v333
      %v506 = vpop.f32.mrb[0].mxu0
      %v507 = vadd.f32 %v317, %v506
      %v508 = vpop.f32.mrb[0].mxu0
      %509 = vmatprep.mubr.f32.mxu0 0.0
      %510 = vmatmul.mubr.f32.gmra.mrb[0].mxu0 %v336
      %v511 = vpop.f32.mrb[0].mxu0
      %v512 = vadd.f32 %v317, %v511
      %v513 = vpop.f32.mrb[0].mxu0
      %514 = vmatprep.mubr.f32.mxu0 0.0
      %515 = vmatmul.mubr.f32.gmra.mrb[0].mxu0 %v339
      %v516 = vpop.f32.mrb[0].mxu0
      %v517 = vadd.f32 %v317, %v516
      %v518 = vpop.f32.mrb[0].mxu0
      %519 = vmatprep.mubr.f32.mxu0 0.0
      %520 = vmatmul.mubr.f32.gmra.mrb[0].mxu0 %v342
      %v521 = vpop.f32.mrb[0].mxu0
      %v522 = vadd.f32 %v317, %v521
      %v523 = vpop.f32.mrb[0].mxu0
      %524 = vmatprep.mubr.f32.mxu0 0.0
      %525 = vmatmul.mubr.f32.gmra.mrb[0].mxu0 %v345
      %v526 = vpop.f32.mrb[0].mxu0
      %v527 = vadd.f32 %v317, %v526
      %v528 = vpop.f32.mrb[0].mxu0
      %529 = vmatprep.mubr.f32.mxu0 0.0
      %530 = vmatmul.mubr.f32.gmra.mrb[0].mxu0 %v348
      %v531 = vpop.f32.mrb[0].mxu0
      %v532 = vadd.f32 %v317, %v531
      %v533 = vpop.f32.mrb[0].mxu0
      %534 = vmatprep.mubr.f32.mxu0 0.0
      %535 = vmatmul.mubr.f32.gmra.mrb[0].mxu0 %v351
      %v536 = vpop.f32.mrb[0].mxu0
      %v537 = vadd.f32 %v317, %v536
      %v538 = vpop.f32.mrb[0].mxu0
      %539 = vmatprep.mubr.f32.mxu0 0.0
      %540 = vmatmul.mubr.f32.gmra.mrb[0].mxu0 %v354
      %v541 = vpop.f32.mrb[0].mxu0
      %v542 = vadd.f32 %v317, %v541
      %v543 = vpop.f32.mrb[0].mxu0
      %544 = vmatprep.mubr.f32.mxu0 0.0
      %545 = vmatmul.mubr.f32.gmra.mrb[0].mxu0 %v357
      %v546 = vpop.f32.mrb[0].mxu0
      %v547 = vadd.f32 %v317, %v546
      %v548 = vpop.f32.mrb[0].mxu0
      %549 = vmatprep.mubr.f32.mxu0 0.0
      %550 = vmatmul.mubr.f32.gmra.mrb[0].mxu0 %v360
      %v551 = vpop.f32.mrb[0].mxu0
      %v552 = vadd.f32 %v317, %v551
      %v553 = vpop.f32.mrb[0].mxu0
      %554 = vmatprep.mubr.f32.mxu0 0.0
      %555 = vmatmul.mubr.f32.gmra.mrb[0].mxu0 %v363
      %v556 = vpop.f32.mrb[0].mxu0
      %v557 = vadd.f32 %v317, %v556
      %v558 = vpop.f32.mrb[0].mxu0
      %559 = vmatprep.mubr.f32.mxu0 0.0
      %560 = vmatmul.mubr.f32.gmra.mrb[0].mxu0 %v366
      %v561 = vpop.f32.mrb[0].mxu0
      %v562 = vadd.f32 %v317, %v561
      %v563 = vpop.f32.mrb[0].mxu0
      %564 = vmatprep.mubr.f32.mxu0 0.0
      %565 = vmatmul.mubr.f32.gmra.mrb[0].mxu0 %v369
      %v566 = vpop.f32.mrb[0].mxu0
      %v567 = vadd.f32 %v317, %v566
      %v568 = vpop.f32.mrb[0].mxu0
      %569 = vmatprep.mubr.f32.mxu0 0.0
      %570 = vmatmul.mubr.f32.gmra.mrb[0].mxu0 %v372
      %v571 = vpop.f32.mrb[0].mxu0
      %v572 = vadd.f32 %v317, %v571
      %v573 = vpop.f32.mrb[0].mxu0
      %574 = vmatprep.mubr.f32.mxu0 0.0
      %575 = vmatmul.mubr.f32.gmra.mrb[0].mxu0 %v375
      %v576 = vpop.f32.mrb[0].mxu0
      %v577 = vadd.f32 %v317, %v576
      %v578 = vpop.f32.mrb[0].mxu0
      %579 = vmatprep.mubr.f32.mxu0 0.0
      %580 = vmatmul.mubr.f32.gmra.mrb[0].mxu0 %v378
      %v581 = vpop.f32.mrb[0].mxu0
      %v582 = vadd.f32 %v317, %v581
      %v583 = vpop.f32.mrb[0].mxu0
      %584 = vmatprep.mubr.f32.mxu0 0.0
      %585 = vmatmul.mubr.f32.gmra.mrb[0].mxu0 %v381
      %v586 = vpop.f32.mrb[0].mxu0
      %v587 = vadd.f32 %v317, %v586
      %v588 = vpop.f32.mrb[0].mxu0
      %589 = vmatprep.mubr.f32.mxu0 0.0
      %590 = vmatmul.mubr.f32.gmra.mrb[0].mxu0 %v384
      %v591 = vpop.f32.mrb[0].mxu0
      %v592 = vadd.f32 %v317, %v591
      %v593 = vpop.f32.mrb[0].mxu0
      %594 = vmatprep.mubr.f32.mxu0 0.0
      %595 = vmatmul.mubr.f32.gmra.mrb[0].mxu0 %v387
      %v596 = vpop.f32.mrb[0].mxu0
      %v597 = vadd.f32 %v317, %v596
      %v598 = vpop.f32.mrb[0].mxu0
      %599 = vmatprep.mubr.f32.mxu0 0.0
      %600 = vmatmul.mubr.f32.gmra.mrb[0].mxu0 %v390
      %v601 = vpop.f32.mrb[0].mxu0
      %v602 = vadd.f32 %v317, %v601
      %v603 = vpop.f32.mrb[0].mxu0
      %604 = vmatprep.mubr.f32.mxu0 0.0
      %605 = vmatmul.mubr.f32.gmra.mrb[0].mxu0 %v393
      %v606 = vpop.f32.mrb[0].mxu0
      %v607 = vadd.f32 %v317, %v606
      %v608 = vpop.f32.mrb[0].mxu0
      %609 = vmatprep.mubr.f32.mxu0 0.0
      %610 = vmatmul.mubr.f32.gmra.mrb[0].mxu0 %v396
      %v611 = vpop.f32.mrb[0].mxu0
      %v612 = vadd.f32 %v317, %v611
      %v613 = vpop.f32.mrb[0].mxu0
      %614 = vmatprep.mubr.f32.mxu0 0.0
      %615 = vmatmul.mubr.f32.gmra.mrb[0].mxu0 %v399
      %v616 = vpop.f32.mrb[0].mxu0
      %v617 = vadd.f32 %v317, %v616
      %v618 = vpop.f32.mrb[0].mxu0
      %619 = vmatprep.mubr.f32.mxu0 0.0
      %620 = vmatmul.mubr.f32.gmra.mrb[0].mxu0 %v402
      %v621 = vpop.f32.mrb[0].mxu0
      %v622 = vadd.f32 %v317, %v621
      %v623 = vpop.f32.mrb[0].mxu0
      %624 = vmatprep.mubr.f32.mxu0 0.0
      %625 = vmatmul.mubr.f32.gmra.mrb[0].mxu0 %v405
      %v626 = vpop.f32.mrb[0].mxu0
      %v627 = vadd.f32 %v317, %v626
      %v628 = vpop.f32.mrb[0].mxu0
      %629 = vmatprep.mubr.f32.mxu0 0.0
      %630 = vmatmul.mubr.f32.gmra.mrb[0].mxu0 %v408
      %v631 = vpop.f32.mrb[0].mxu0
      %v632 = vadd.f32 %v317, %v631
      %v633 = vpop.f32.mrb[0].mxu0
      %634 = vmatprep.mubr.f32.mxu0 0.0
      %635 = vmatmul.mubr.f32.gmra.mrb[0].mxu0 %v411
      %v636 = vpop.f32.mrb[0].mxu0
      %v637 = vadd.f32 %v317, %v636
      %v638 = vpop.f32.mrb[0].mxu0
      %639 = vmatprep.mubr.f32.mxu0 0.0
      %640 = vmatmul.mubr.f32.gmra.mrb[0].mxu0 %v414
      %v641 = vpop.f32.mrb[0].mxu0
      %v642 = vadd.f32 %v317, %v641
      %v643 = vpop.f32.mrb[0].mxu0
      %644 = vdwg.mxu0
      %vm645 = vcmask 130048
      %646 = vst.msk [vmem:[#allocation2] sm:$0xff] %vm645, 0.0
      %647 = vst.msk [vmem:[#allocation2 + $0x8] sm:$0xff] %vm645, 0.0
      %vm648 = vcmask 123904
      %649 = vst.msk [vmem:[#allocation2 + $0x10] sm:$0x3] %vm648, 0.0
      %s650 = scalar_lea.vmem [#allocation2], 408
      %651 = vst.msk [vmem:[%s650] sm:$0xff] %vm645, 0.0
      %652 = vst.msk [vmem:[%s650 + $0x8] sm:$0xff] %vm645, 0.0
      %653 = vst.msk [vmem:[%s650 + $0x10] sm:$0x3] %vm648, 0.0
      %s654 = scalar_lea.vmem [#allocation2], 24
      %vm655 = vcmask 122880
      %656 = vst.msk [vmem:[%s654] sm:$0x1] %vm655, 0.0
      %657 = vst.msk [vmem:[%s654 + $0x18] sm:$0x1] %vm655, 0.0
      %658 = vst.msk [vmem:[%s654 + $0x30] sm:$0x1] %vm655, 0.0
      %659 = vst.msk [vmem:[%s654 + $0x48] sm:$0x1] %vm655, 0.0
      %660 = vst.msk [vmem:[%s654 + $0x60] sm:$0x1] %vm655, 0.0
      %661 = vst.msk [vmem:[%s654 + $0x78] sm:$0x1] %vm655, 0.0
      %662 = vst.msk [vmem:[%s654 + $0x90] sm:$0x1] %vm655, 0.0
      %663 = vst.msk [vmem:[%s654 + $0xa8] sm:$0x1] %vm655, 0.0
      %664 = vst.msk [vmem:[%s654 + $0xc0] sm:$0x1] %vm655, 0.0
      %665 = vst.msk [vmem:[%s654 + $0xd8] sm:$0x1] %vm655, 0.0
      %666 = vst.msk [vmem:[%s654 + $0xf0] sm:$0x1] %vm655, 0.0
      %667 = vst.msk [vmem:[%s654 + $0x108] sm:$0x1] %vm655, 0.0
      %668 = vst.msk [vmem:[%s654 + $0x120] sm:$0x1] %vm655, 0.0
      %669 = vst.msk [vmem:[%s654 + $0x138] sm:$0x1] %vm655, 0.0
      %670 = vst.msk [vmem:[%s654 + $0x150] sm:$0x1] %vm655, 0.0
      %671 = vst.msk [vmem:[%s654 + $0x168] sm:$0x1] %vm655, 0.0
      %672 = vst.msk [vmem:[%s654 + $0x11] sm:$0x1] %vm655, 0.0
      %673 = vst.msk [vmem:[%s654 + $0x29] sm:$0x1] %vm655, 0.0
      %674 = vst.msk [vmem:[%s654 + $0x41] sm:$0x1] %vm655, 0.0
      %675 = vst.msk [vmem:[%s654 + $0x59] sm:$0x1] %vm655, 0.0
      %676 = vst.msk [vmem:[%s654 + $0x71] sm:$0x1] %vm655, 0.0
      %677 = vst.msk [vmem:[%s654 + $0x89] sm:$0x1] %vm655, 0.0
      %678 = vst.msk [vmem:[%s654 + $0xa1] sm:$0x1] %vm655, 0.0
      %679 = vst.msk [vmem:[%s654 + $0xb9] sm:$0x1] %vm655, 0.0
      %680 = vst.msk [vmem:[%s654 + $0xd1] sm:$0x1] %vm655, 0.0
      %681 = vst.msk [vmem:[%s654 + $0xe9] sm:$0x1] %vm655, 0.0
      %682 = vst.msk [vmem:[%s654 + $0x101] sm:$0x1] %vm655, 0.0
      %683 = vst.msk [vmem:[%s654 + $0x119] sm:$0x1] %vm655, 0.0
      %684 = vst.msk [vmem:[%s654 + $0x131] sm:$0x1] %vm655, 0.0
      %685 = vst.msk [vmem:[%s654 + $0x149] sm:$0x1] %vm655, 0.0
      %686 = vst.msk [vmem:[%s654 + $0x161] sm:$0x1] %vm655, 0.0
      %687 = vst.msk [vmem:[%s654 + $0x179] sm:$0x1] %vm655, 0.0
      %688 = vst.msk [vmem:[%s654 + $0x1] sm:$0xff] %vm645, %v487
      %689 = vst.msk [vmem:[%s654 + $0x9] sm:$0xff] %vm645, %v492
      %690 = vst.msk [vmem:[%s654 + $0x19] sm:$0xff] %vm645, %v497
      %691 = vst.msk [vmem:[%s654 + $0x21] sm:$0xff] %vm645, %v502
      %692 = vst.msk [vmem:[%s654 + $0x31] sm:$0xff] %vm645, %v507
      %693 = vst.msk [vmem:[%s654 + $0x39] sm:$0xff] %vm645, %v512
      %694 = vst.msk [vmem:[%s654 + $0x49] sm:$0xff] %vm645, %v517
      %695 = vst.msk [vmem:[%s654 + $0x51] sm:$0xff] %vm645, %v522
      %696 = vst.msk [vmem:[%s654 + $0x61] sm:$0xff] %vm645, %v527
      %697 = vst.msk [vmem:[%s654 + $0x69] sm:$0xff] %vm645, %v532
      %698 = vst.msk [vmem:[%s654 + $0x79] sm:$0xff] %vm645, %v537
      %699 = vst.msk [vmem:[%s654 + $0x81] sm:$0xff] %vm645, %v542
      %700 = vst.msk [vmem:[%s654 + $0x91] sm:$0xff] %vm645, %v547
      %701 = vst.msk [vmem:[%s654 + $0x99] sm:$0xff] %vm645, %v552
      %702 = vst.msk [vmem:[%s654 + $0xa9] sm:$0xff] %vm645, %v557
      %703 = vst.msk [vmem:[%s654 + $0xb1] sm:$0xff] %vm645, %v562
      %704 = vst.msk [vmem:[%s654 + $0xc1] sm:$0xff] %vm645, %v567
      %705 = vst.msk [vmem:[%s654 + $0xc9] sm:$0xff] %vm645, %v572
      %706 = vst.msk [vmem:[%s654 + $0xd9] sm:$0xff] %vm645, %v577
      %707 = vst.msk [vmem:[%s654 + $0xe1] sm:$0xff] %vm645, %v582
      %708 = vst.msk [vmem:[%s654 + $0xf1] sm:$0xff] %vm645, %v587
      %709 = vst.msk [vmem:[%s654 + $0xf9] sm:$0xff] %vm645, %v592
      %710 = vst.msk [vmem:[%s654 + $0x109] sm:$0xff] %vm645, %v597
      %711 = vst.msk [vmem:[%s654 + $0x111] sm:$0xff] %vm645, %v602
      %712 = vst.msk [vmem:[%s654 + $0x121] sm:$0xff] %vm645, %v607
      %713 = vst.msk [vmem:[%s654 + $0x129] sm:$0xff] %vm645, %v612
      %714 = vst.msk [vmem:[%s654 + $0x139] sm:$0xff] %vm645, %v617
      %715 = vst.msk [vmem:[%s654 + $0x141] sm:$0xff] %vm645, %v622
      %716 = vst.msk [vmem:[%s654 + $0x151] sm:$0xff] %vm645, %v627
      %717 = vst.msk [vmem:[%s654 + $0x159] sm:$0xff] %vm645, %v632
      %718 = vst.msk [vmem:[%s654 + $0x169] sm:$0xff] %vm645, %v637
      %719 = vst.msk [vmem:[%s654 + $0x171] sm:$0xff] %vm645, %v642
      %v720 = vld [vmem:[%s3] sm:$0xff]
      %v721 = vld [vmem:[%s3 + $0x8] sm:$0x1]
      %v722 = vld [vmem:[%s4] sm:$0x1]
      %v723 = vlaneseq
      %v724 = vshrl.u32 %v723, 7
      %v725 = vsub.s32 4, %v724
      %v726 = vrot.slane %v720, %v725
      %v727 = vmul.f32 %v487, %v726
      %v728 = vmul.f32 %v492, %v726
      %v729 = vmul.f32 %v497, %v726
      %v730 = vmul.f32 %v502, %v726
      %v731 = vmul.f32 %v507, %v726
      %v732 = vmul.f32 %v512, %v726
      %v733 = vmul.f32 %v517, %v726
      %v734 = vmul.f32 %v522, %v726
      %v735 = vmul.f32 %v527, %v726
      %v736 = vmul.f32 %v532, %v726
      %v737 = vmul.f32 %v537, %v726
      %v738 = vmul.f32 %v542, %v726
      %v739 = vmul.f32 %v547, %v726
      %v740 = vmul.f32 %v552, %v726
      %v741 = vmul.f32 %v557, %v726
      %v742 = vmul.f32 %v562, %v726
      %v743 = vmul.f32 %v567, %v726
      %v744 = vmul.f32 %v572, %v726
      %v745 = vmul.f32 %v577, %v726
      %v746 = vmul.f32 %v582, %v726
      %v747 = vmul.f32 %v587, %v726
      %v748 = vmul.f32 %v592, %v726
      %v749 = vmul.f32 %v597, %v726
      %v750 = vmul.f32 %v602, %v726
      %v751 = vmul.f32 %v607, %v726
      %v752 = vmul.f32 %v612, %v726
      %v753 = vmul.f32 %v617, %v726
      %v754 = vmul.f32 %v622, %v726
      %v755 = vmul.f32 %v627, %v726
      %v756 = vmul.f32 %v632, %v726
      %v757 = vmul.f32 %v637, %v726
      %v758 = vmul.f32 %v642, %v726
      %v760 = vlaneseq
      %v761 = vshrl.u32 %v760, 7
      %v762 = vsub.s32 0, %v761
      %v763 = vrot.slane %v722, %v762
      %v765 = vadd.f32 %v763, %v727
      %v766 = vadd.f32 %v763, %v728
      %v767 = vadd.f32 %v763, %v729
      %v768 = vadd.f32 %v763, %v730
      %v769 = vadd.f32 %v763, %v731
      %v770 = vadd.f32 %v763, %v732
      %v771 = vadd.f32 %v763, %v733
      %v772 = vadd.f32 %v763, %v734
      %v773 = vadd.f32 %v763, %v735
      %v774 = vadd.f32 %v763, %v736
      %v775 = vadd.f32 %v763, %v737
      %v776 = vadd.f32 %v763, %v738
      %v777 = vadd.f32 %v763, %v739
      %v778 = vadd.f32 %v763, %v740
      %v779 = vadd.f32 %v763, %v741
      %v780 = vadd.f32 %v763, %v742
      %v781 = vadd.f32 %v763, %v743
      %v782 = vadd.f32 %v763, %v744
      %v783 = vadd.f32 %v763, %v745
      %v784 = vadd.f32 %v763, %v746
      %v785 = vadd.f32 %v763, %v747
      %v786 = vadd.f32 %v763, %v748
      %v787 = vadd.f32 %v763, %v749
      %v788 = vadd.f32 %v763, %v750
      %v789 = vadd.f32 %v763, %v751
      %v790 = vadd.f32 %v763, %v752
      %v791 = vadd.f32 %v763, %v753
      %v792 = vadd.f32 %v763, %v754
      %v793 = vadd.f32 %v763, %v755
      %v794 = vadd.f32 %v763, %v756
      %v795 = vadd.f32 %v763, %v757
      %v796 = vadd.f32 %v763, %v758
      %v797 = vld [vmem:[#allocation2] sm:$0xff]
      %v798 = vld [vmem:[#allocation2 + $0x8] sm:$0xff]
      %v799 = vld [vmem:[#allocation2 + $0x18] sm:$0xff]
      %v800 = vld [vmem:[#allocation2 + $0x20] sm:$0xff]
      %v801 = vld [vmem:[#allocation2 + $0x30] sm:$0xff]
      %v802 = vld [vmem:[#allocation2 + $0x38] sm:$0xff]
      %v803 = vld [vmem:[#allocation2 + $0x48] sm:$0xff]
      %v804 = vld [vmem:[#allocation2 + $0x50] sm:$0xff]
      %v805 = vld [vmem:[#allocation2 + $0x60] sm:$0xff]
      %v806 = vld [vmem:[#allocation2 + $0x68] sm:$0xff]
      %v807 = vld [vmem:[#allocation2 + $0x78] sm:$0xff]
      %v808 = vld [vmem:[#allocation2 + $0x80] sm:$0xff]
      %v809 = vld [vmem:[#allocation2 + $0x90] sm:$0xff]
      %v810 = vld [vmem:[#allocation2 + $0x98] sm:$0xff]
      %v811 = vld [vmem:[#allocation2 + $0xa8] sm:$0xff]
      %v812 = vld [vmem:[#allocation2 + $0xb0] sm:$0xff]
      %v813 = vld [vmem:[#allocation2 + $0xc0] sm:$0xff]
      %v814 = vld [vmem:[#allocation2 + $0xc8] sm:$0xff]
      %v815 = vld [vmem:[#allocation2 + $0xd8] sm:$0xff]
      %v816 = vld [vmem:[#allocation2 + $0xe0] sm:$0xff]
      %v817 = vld [vmem:[#allocation2 + $0xf0] sm:$0xff]
      %v818 = vld [vmem:[#allocation2 + $0xf8] sm:$0xff]
      %v819 = vld [vmem:[#allocation2 + $0x108] sm:$0xff]
      %v820 = vld [vmem:[#allocation2 + $0x110] sm:$0xff]
      %v821 = vld [vmem:[#allocation2 + $0x120] sm:$0xff]
      %v822 = vld [vmem:[#allocation2 + $0x128] sm:$0xff]
      %v823 = vld [vmem:[#allocation2 + $0x138] sm:$0xff]
      %v824 = vld [vmem:[#allocation2 + $0x140] sm:$0xff]
      %v825 = vld [vmem:[#allocation2 + $0x150] sm:$0xff]
      %v826 = vld [vmem:[#allocation2 + $0x158] sm:$0xff]
      %v827 = vld [vmem:[#allocation2 + $0x168] sm:$0xff]
      %v828 = vld [vmem:[#allocation2 + $0x170] sm:$0xff]
      %v829 = vlaneseq
      %v830 = vshrl.u32 %v829, 7
      %v831 = vsub.s32 0, %v830
      %v832 = vrot.slane %v720, %v831
      %v833 = vmul.f32 %v797, %v832
      %v834 = vmul.f32 %v798, %v832
      %v835 = vmul.f32 %v799, %v832
      %v836 = vmul.f32 %v800, %v832
      %v837 = vmul.f32 %v801, %v832
      %v838 = vmul.f32 %v802, %v832
      %v839 = vmul.f32 %v803, %v832
      %v840 = vmul.f32 %v804, %v832
      %v841 = vmul.f32 %v805, %v832
      %v842 = vmul.f32 %v806, %v832
      %v843 = vmul.f32 %v807, %v832
      %v844 = vmul.f32 %v808, %v832
      %v845 = vmul.f32 %v809, %v832
      %v846 = vmul.f32 %v810, %v832
      %v847 = vmul.f32 %v811, %v832
      %v848 = vmul.f32 %v812, %v832
      %v849 = vmul.f32 %v813, %v832
      %v850 = vmul.f32 %v814, %v832
      %v851 = vmul.f32 %v815, %v832
      %v852 = vmul.f32 %v816, %v832
      %v853 = vmul.f32 %v817, %v832
      %v854 = vmul.f32 %v818, %v832
      %v855 = vmul.f32 %v819, %v832
      %v856 = vmul.f32 %v820, %v832
      %v857 = vmul.f32 %v821, %v832
      %v858 = vmul.f32 %v822, %v832
      %v859 = vmul.f32 %v823, %v832
      %v860 = vmul.f32 %v824, %v832
      %v861 = vmul.f32 %v825, %v832
      %v862 = vmul.f32 %v826, %v832
      %v863 = vmul.f32 %v827, %v832
      %v864 = vmul.f32 %v828, %v832
      %v865 = vadd.f32 %v765, %v833
      %v866 = vadd.f32 %v766, %v834
      %v867 = vadd.f32 %v767, %v835
      %v868 = vadd.f32 %v768, %v836
      %v869 = vadd.f32 %v769, %v837
      %v870 = vadd.f32 %v770, %v838
      %v871 = vadd.f32 %v771, %v839
      %v872 = vadd.f32 %v772, %v840
      %v873 = vadd.f32 %v773, %v841
      %v874 = vadd.f32 %v774, %v842
      %v875 = vadd.f32 %v775, %v843
      %v876 = vadd.f32 %v776, %v844
      %v877 = vadd.f32 %v777, %v845
      %v878 = vadd.f32 %v778, %v846
      %v879 = vadd.f32 %v779, %v847
      %v880 = vadd.f32 %v780, %v848
      %v881 = vadd.f32 %v781, %v849
      %v882 = vadd.f32 %v782, %v850
      %v883 = vadd.f32 %v783, %v851
      %v884 = vadd.f32 %v784, %v852
      %v885 = vadd.f32 %v785, %v853
      %v886 = vadd.f32 %v786, %v854
      %v887 = vadd.f32 %v787, %v855
      %v888 = vadd.f32 %v788, %v856
      %v889 = vadd.f32 %v789, %v857
      %v890 = vadd.f32 %v790, %v858
      %v891 = vadd.f32 %v791, %v859
      %v892 = vadd.f32 %v792, %v860
      %v893 = vadd.f32 %v793, %v861
      %v894 = vadd.f32 %v794, %v862
      %v895 = vadd.f32 %v795, %v863
      %v896 = vadd.f32 %v796, %v864
      %v897 = vld [vmem:[#allocation2 + $0x1] sm:$0xff]
      %v898 = vld [vmem:[#allocation2 + $0x9] sm:$0xff]
      %v899 = vld [vmem:[#allocation2 + $0x19] sm:$0xff]
      %v900 = vld [vmem:[#allocation2 + $0x21] sm:$0xff]
      %v901 = vld [vmem:[#allocation2 + $0x31] sm:$0xff]
      %v902 = vld [vmem:[#allocation2 + $0x39] sm:$0xff]
      %v903 = vld [vmem:[#allocation2 + $0x49] sm:$0xff]
      %v904 = vld [vmem:[#allocation2 + $0x51] sm:$0xff]
      %v905 = vld [vmem:[#allocation2 + $0x61] sm:$0xff]
      %v906 = vld [vmem:[#allocation2 + $0x69] sm:$0xff]
      %v907 = vld [vmem:[#allocation2 + $0x79] sm:$0xff]
      %v908 = vld [vmem:[#allocation2 + $0x81] sm:$0xff]
      %v909 = vld [vmem:[#allocation2 + $0x91] sm:$0xff]
      %v910 = vld [vmem:[#allocation2 + $0x99] sm:$0xff]
      %v911 = vld [vmem:[#allocation2 + $0xa9] sm:$0xff]
      %v912 = vld [vmem:[#allocation2 + $0xb1] sm:$0xff]
      %v913 = vld [vmem:[#allocation2 + $0xc1] sm:$0xff]
      %v914 = vld [vmem:[#allocation2 + $0xc9] sm:$0xff]
      %v915 = vld [vmem:[#allocation2 + $0xd9] sm:$0xff]
      %v916 = vld [vmem:[#allocation2 + $0xe1] sm:$0xff]
      %v917 = vld [vmem:[#allocation2 + $0xf1] sm:$0xff]
      %v918 = vld [vmem:[#allocation2 + $0xf9] sm:$0xff]
      %v919 = vld [vmem:[#allocation2 + $0x109] sm:$0xff]
      %v920 = vld [vmem:[#allocation2 + $0x111] sm:$0xff]
      %v921 = vld [vmem:[#allocation2 + $0x121] sm:$0xff]
      %v922 = vld [vmem:[#allocation2 + $0x129] sm:$0xff]
      %v923 = vld [vmem:[#allocation2 + $0x139] sm:$0xff]
      %v924 = vld [vmem:[#allocation2 + $0x141] sm:$0xff]
      %v925 = vld [vmem:[#allocation2 + $0x151] sm:$0xff]
      %v926 = vld [vmem:[#allocation2 + $0x159] sm:$0xff]
      %v927 = vld [vmem:[#allocation2 + $0x169] sm:$0xff]
      %v928 = vld [vmem:[#allocation2 + $0x171] sm:$0xff]
      %v929 = vlaneseq
      %v930 = vshrl.u32 %v929, 7
      %v931 = vsub.s32 1, %v930
      %v932 = vrot.slane %v720, %v931
      %v933 = vmul.f32 %v897, %v932
      %v934 = vmul.f32 %v898, %v932
      %v935 = vmul.f32 %v899, %v932
      %v936 = vmul.f32 %v900, %v932
      %v937 = vmul.f32 %v901, %v932
      %v938 = vmul.f32 %v902, %v932
      %v939 = vmul.f32 %v903, %v932
      %v940 = vmul.f32 %v904, %v932
      %v941 = vmul.f32 %v905, %v932
      %v942 = vmul.f32 %v906, %v932
      %v943 = vmul.f32 %v907, %v932
      %v944 = vmul.f32 %v908, %v932
      %v945 = vmul.f32 %v909, %v932
      %v946 = vmul.f32 %v910, %v932
      %v947 = vmul.f32 %v911, %v932
      %v948 = vmul.f32 %v912, %v932
      %v949 = vmul.f32 %v913, %v932
      %v950 = vmul.f32 %v914, %v932
      %v951 = vmul.f32 %v915, %v932
      %v952 = vmul.f32 %v916, %v932
      %v953 = vmul.f32 %v917, %v932
      %v954 = vmul.f32 %v918, %v932
      %v955 = vmul.f32 %v919, %v932
      %v956 = vmul.f32 %v920, %v932
      %v957 = vmul.f32 %v921, %v932
      %v958 = vmul.f32 %v922, %v932
      %v959 = vmul.f32 %v923, %v932
      %v960 = vmul.f32 %v924, %v932
      %v961 = vmul.f32 %v925, %v932
      %v962 = vmul.f32 %v926, %v932
      %v963 = vmul.f32 %v927, %v932
      %v964 = vmul.f32 %v928, %v932
      %v965 = vadd.f32 %v865, %v933
      %v966 = vadd.f32 %v866, %v934
      %v967 = vadd.f32 %v867, %v935
      %v968 = vadd.f32 %v868, %v936
      %v969 = vadd.f32 %v869, %v937
      %v970 = vadd.f32 %v870, %v938
      %v971 = vadd.f32 %v871, %v939
      %v972 = vadd.f32 %v872, %v940
      %v973 = vadd.f32 %v873, %v941
      %v974 = vadd.f32 %v874, %v942
      %v975 = vadd.f32 %v875, %v943
      %v976 = vadd.f32 %v876, %v944
      %v977 = vadd.f32 %v877, %v945
      %v978 = vadd.f32 %v878, %v946
      %v979 = vadd.f32 %v879, %v947
      %v980 = vadd.f32 %v880, %v948
      %v981 = vadd.f32 %v881, %v949
      %v982 = vadd.f32 %v882, %v950
      %v983 = vadd.f32 %v883, %v951
      %v984 = vadd.f32 %v884, %v952
      %v985 = vadd.f32 %v885, %v953
      %v986 = vadd.f32 %v886, %v954
      %v987 = vadd.f32 %v887, %v955
      %v988 = vadd.f32 %v888, %v956
      %v989 = vadd.f32 %v889, %v957
      %v990 = vadd.f32 %v890, %v958
      %v991 = vadd.f32 %v891, %v959
      %v992 = vadd.f32 %v892, %v960
      %v993 = vadd.f32 %v893, %v961
      %v994 = vadd.f32 %v894, %v962
      %v995 = vadd.f32 %v895, %v963
      %v996 = vadd.f32 %v896, %v964
      %v997 = vld [vmem:[#allocation2 + $0x2] sm:$0xff]
      %v998 = vld [vmem:[#allocation2 + $0xa] sm:$0xff]
      %v999 = vld [vmem:[#allocation2 + $0x1a] sm:$0xff]
      %v1000 = vld [vmem:[#allocation2 + $0x22] sm:$0xff]
      %v1001 = vld [vmem:[#allocation2 + $0x32] sm:$0xff]
      %v1002 = vld [vmem:[#allocation2 + $0x3a] sm:$0xff]
      %v1003 = vld [vmem:[#allocation2 + $0x4a] sm:$0xff]
      %v1004 = vld [vmem:[#allocation2 + $0x52] sm:$0xff]
      %v1005 = vld [vmem:[#allocation2 + $0x62] sm:$0xff]
      %v1006 = vld [vmem:[#allocation2 + $0x6a] sm:$0xff]
      %v1007 = vld [vmem:[#allocation2 + $0x7a] sm:$0xff]
      %v1008 = vld [vmem:[#allocation2 + $0x82] sm:$0xff]
      %v1009 = vld [vmem:[#allocation2 + $0x92] sm:$0xff]
      %v1010 = vld [vmem:[#allocation2 + $0x9a] sm:$0xff]
      %v1011 = vld [vmem:[#allocation2 + $0xaa] sm:$0xff]
      %v1012 = vld [vmem:[#allocation2 + $0xb2] sm:$0xff]
      %v1013 = vld [vmem:[#allocation2 + $0xc2] sm:$0xff]
      %v1014 = vld [vmem:[#allocation2 + $0xca] sm:$0xff]
      %v1015 = vld [vmem:[#allocation2 + $0xda] sm:$0xff]
      %v1016 = vld [vmem:[#allocation2 + $0xe2] sm:$0xff]
      %v1017 = vld [vmem:[#allocation2 + $0xf2] sm:$0xff]
      %v1018 = vld [vmem:[#allocation2 + $0xfa] sm:$0xff]
      %v1019 = vld [vmem:[#allocation2 + $0x10a] sm:$0xff]
      %v1020 = vld [vmem:[#allocation2 + $0x112] sm:$0xff]
      %v1021 = vld [vmem:[#allocation2 + $0x122] sm:$0xff]
      %v1022 = vld [vmem:[#allocation2 + $0x12a] sm:$0xff]
      %v1023 = vld [vmem:[#allocation2 + $0x13a] sm:$0xff]
      %v1024 = vld [vmem:[#allocation2 + $0x142] sm:$0xff]
      %v1025 = vld [vmem:[#allocation2 + $0x152] sm:$0xff]
      %v1026 = vld [vmem:[#allocation2 + $0x15a] sm:$0xff]
      %v1027 = vld [vmem:[#allocation2 + $0x16a] sm:$0xff]
      %v1028 = vld [vmem:[#allocation2 + $0x172] sm:$0xff]
      %v1029 = vlaneseq
      %v1030 = vshrl.u32 %v1029, 7
      %v1031 = vsub.s32 2, %v1030
      %v1032 = vrot.slane %v720, %v1031
      %v1033 = vmul.f32 %v997, %v1032
      %v1034 = vmul.f32 %v998, %v1032
      %v1035 = vmul.f32 %v999, %v1032
      %v1036 = vmul.f32 %v1000, %v1032
      %v1037 = vmul.f32 %v1001, %v1032
      %v1038 = vmul.f32 %v1002, %v1032
      %v1039 = vmul.f32 %v1003, %v1032
      %v1040 = vmul.f32 %v1004, %v1032
      %v1041 = vmul.f32 %v1005, %v1032
      %v1042 = vmul.f32 %v1006, %v1032
      %v1043 = vmul.f32 %v1007, %v1032
      %v1044 = vmul.f32 %v1008, %v1032
      %v1045 = vmul.f32 %v1009, %v1032
      %v1046 = vmul.f32 %v1010, %v1032
      %v1047 = vmul.f32 %v1011, %v1032
      %v1048 = vmul.f32 %v1012, %v1032
      %v1049 = vmul.f32 %v1013, %v1032
      %v1050 = vmul.f32 %v1014, %v1032
      %v1051 = vmul.f32 %v1015, %v1032
      %v1052 = vmul.f32 %v1016, %v1032
      %v1053 = vmul.f32 %v1017, %v1032
      %v1054 = vmul.f32 %v1018, %v1032
      %v1055 = vmul.f32 %v1019, %v1032
      %v1056 = vmul.f32 %v1020, %v1032
      %v1057 = vmul.f32 %v1021, %v1032
      %v1058 = vmul.f32 %v1022, %v1032
      %v1059 = vmul.f32 %v1023, %v1032
      %v1060 = vmul.f32 %v1024, %v1032
      %v1061 = vmul.f32 %v1025, %v1032
      %v1062 = vmul.f32 %v1026, %v1032
      %v1063 = vmul.f32 %v1027, %v1032
      %v1064 = vmul.f32 %v1028, %v1032
      %v1065 = vadd.f32 %v965, %v1033
      %v1066 = vadd.f32 %v966, %v1034
      %v1067 = vadd.f32 %v967, %v1035
      %v1068 = vadd.f32 %v968, %v1036
      %v1069 = vadd.f32 %v969, %v1037
      %v1070 = vadd.f32 %v970, %v1038
      %v1071 = vadd.f32 %v971, %v1039
      %v1072 = vadd.f32 %v972, %v1040
      %v1073 = vadd.f32 %v973, %v1041
      %v1074 = vadd.f32 %v974, %v1042
      %v1075 = vadd.f32 %v975, %v1043
      %v1076 = vadd.f32 %v976, %v1044
      %v1077 = vadd.f32 %v977, %v1045
      %v1078 = vadd.f32 %v978, %v1046
      %v1079 = vadd.f32 %v979, %v1047
      %v1080 = vadd.f32 %v980, %v1048
      %v1081 = vadd.f32 %v981, %v1049
      %v1082 = vadd.f32 %v982, %v1050
      %v1083 = vadd.f32 %v983, %v1051
      %v1084 = vadd.f32 %v984, %v1052
      %v1085 = vadd.f32 %v985, %v1053
      %v1086 = vadd.f32 %v986, %v1054
      %v1087 = vadd.f32 %v987, %v1055
      %v1088 = vadd.f32 %v988, %v1056
      %v1089 = vadd.f32 %v989, %v1057
      %v1090 = vadd.f32 %v990, %v1058
      %v1091 = vadd.f32 %v991, %v1059
      %v1092 = vadd.f32 %v992, %v1060
      %v1093 = vadd.f32 %v993, %v1061
      %v1094 = vadd.f32 %v994, %v1062
      %v1095 = vadd.f32 %v995, %v1063
      %v1096 = vadd.f32 %v996, %v1064
      %v1097 = vld [vmem:[%s654] sm:$0xff]
      %v1098 = vld [vmem:[%s654 + $0x8] sm:$0xff]
      %v1099 = vld [vmem:[%s654 + $0x18] sm:$0xff]
      %v1100 = vld [vmem:[%s654 + $0x20] sm:$0xff]
      %v1101 = vld [vmem:[%s654 + $0x30] sm:$0xff]
      %v1102 = vld [vmem:[%s654 + $0x38] sm:$0xff]
      %v1103 = vld [vmem:[%s654 + $0x48] sm:$0xff]
      %v1104 = vld [vmem:[%s654 + $0x50] sm:$0xff]
      %v1105 = vld [vmem:[%s654 + $0x60] sm:$0xff]
      %v1106 = vld [vmem:[%s654 + $0x68] sm:$0xff]
      %v1107 = vld [vmem:[%s654 + $0x78] sm:$0xff]
      %v1108 = vld [vmem:[%s654 + $0x80] sm:$0xff]
      %v1109 = vld [vmem:[%s654 + $0x90] sm:$0xff]
      %v1110 = vld [vmem:[%s654 + $0x98] sm:$0xff]
      %v1111 = vld [vmem:[%s654 + $0xa8] sm:$0xff]
      %v1112 = vld [vmem:[%s654 + $0xb0] sm:$0xff]
      %v1113 = vld [vmem:[%s654 + $0xc0] sm:$0xff]
      %v1114 = vld [vmem:[%s654 + $0xc8] sm:$0xff]
      %v1115 = vld [vmem:[%s654 + $0xd8] sm:$0xff]
      %v1116 = vld [vmem:[%s654 + $0xe0] sm:$0xff]
      %v1117 = vld [vmem:[%s654 + $0xf0] sm:$0xff]
      %v1118 = vld [vmem:[%s654 + $0xf8] sm:$0xff]
      %v1119 = vld [vmem:[%s654 + $0x108] sm:$0xff]
      %v1120 = vld [vmem:[%s654 + $0x110] sm:$0xff]
      %v1121 = vld [vmem:[%s654 + $0x120] sm:$0xff]
      %v1122 = vld [vmem:[%s654 + $0x128] sm:$0xff]
      %v1123 = vld [vmem:[%s654 + $0x138] sm:$0xff]
      %v1124 = vld [vmem:[%s654 + $0x140] sm:$0xff]
      %v1125 = vld [vmem:[%s654 + $0x150] sm:$0xff]
      %v1126 = vld [vmem:[%s654 + $0x158] sm:$0xff]
      %v1127 = vld [vmem:[%s654 + $0x168] sm:$0xff]
      %v1128 = vld [vmem:[%s654 + $0x170] sm:$0xff]
      %v1129 = vlaneseq
      %v1130 = vshrl.u32 %v1129, 7
      %v1131 = vsub.s32 3, %v1130
      %v1132 = vrot.slane %v720, %v1131
      %v1133 = vmul.f32 %v1097, %v1132
      %v1134 = vmul.f32 %v1098, %v1132
      %v1135 = vmul.f32 %v1099, %v1132
      %v1136 = vmul.f32 %v1100, %v1132
      %v1137 = vmul.f32 %v1101, %v1132
      %v1138 = vmul.f32 %v1102, %v1132
      %v1139 = vmul.f32 %v1103, %v1132
      %v1140 = vmul.f32 %v1104, %v1132
      %v1141 = vmul.f32 %v1105, %v1132
      %v1142 = vmul.f32 %v1106, %v1132
      %v1143 = vmul.f32 %v1107, %v1132
      %v1144 = vmul.f32 %v1108, %v1132
      %v1145 = vmul.f32 %v1109, %v1132
      %v1146 = vmul.f32 %v1110, %v1132
      %v1147 = vmul.f32 %v1111, %v1132
      %v1148 = vmul.f32 %v1112, %v1132
      %v1149 = vmul.f32 %v1113, %v1132
      %v1150 = vmul.f32 %v1114, %v1132
      %v1151 = vmul.f32 %v1115, %v1132
      %v1152 = vmul.f32 %v1116, %v1132
      %v1153 = vmul.f32 %v1117, %v1132
      %v1154 = vmul.f32 %v1118, %v1132
      %v1155 = vmul.f32 %v1119, %v1132
      %v1156 = vmul.f32 %v1120, %v1132
      %v1157 = vmul.f32 %v1121, %v1132
      %v1158 = vmul.f32 %v1122, %v1132
      %v1159 = vmul.f32 %v1123, %v1132
      %v1160 = vmul.f32 %v1124, %v1132
      %v1161 = vmul.f32 %v1125, %v1132
      %v1162 = vmul.f32 %v1126, %v1132
      %v1163 = vmul.f32 %v1127, %v1132
      %v1164 = vmul.f32 %v1128, %v1132
      %v1165 = vadd.f32 %v1065, %v1133
      %v1166 = vadd.f32 %v1066, %v1134
      %v1167 = vadd.f32 %v1067, %v1135
      %v1168 = vadd.f32 %v1068, %v1136
      %v1169 = vadd.f32 %v1069, %v1137
      %v1170 = vadd.f32 %v1070, %v1138
      %v1171 = vadd.f32 %v1071, %v1139
      %v1172 = vadd.f32 %v1072, %v1140
      %v1173 = vadd.f32 %v1073, %v1141
      %v1174 = vadd.f32 %v1074, %v1142
      %v1175 = vadd.f32 %v1075, %v1143
      %v1176 = vadd.f32 %v1076, %v1144
      %v1177 = vadd.f32 %v1077, %v1145
      %v1178 = vadd.f32 %v1078, %v1146
      %v1179 = vadd.f32 %v1079, %v1147
      %v1180 = vadd.f32 %v1080, %v1148
      %v1181 = vadd.f32 %v1081, %v1149
      %v1182 = vadd.f32 %v1082, %v1150
      %v1183 = vadd.f32 %v1083, %v1151
      %v1184 = vadd.f32 %v1084, %v1152
      %v1185 = vadd.f32 %v1085, %v1153
      %v1186 = vadd.f32 %v1086, %v1154
      %v1187 = vadd.f32 %v1087, %v1155
      %v1188 = vadd.f32 %v1088, %v1156
      %v1189 = vadd.f32 %v1089, %v1157
      %v1190 = vadd.f32 %v1090, %v1158
      %v1191 = vadd.f32 %v1091, %v1159
      %v1192 = vadd.f32 %v1092, %v1160
      %v1193 = vadd.f32 %v1093, %v1161
      %v1194 = vadd.f32 %v1094, %v1162
      %v1195 = vadd.f32 %v1095, %v1163
      %v1196 = vadd.f32 %v1096, %v1164
      %v1197 = vld [vmem:[%s654 + $0x2] sm:$0xff]
      %v1198 = vld [vmem:[%s654 + $0xa] sm:$0xff]
      %v1199 = vld [vmem:[%s654 + $0x1a] sm:$0xff]
      %v1200 = vld [vmem:[%s654 + $0x22] sm:$0xff]
      %v1201 = vld [vmem:[%s654 + $0x32] sm:$0xff]
      %v1202 = vld [vmem:[%s654 + $0x3a] sm:$0xff]
      %v1203 = vld [vmem:[%s654 + $0x4a] sm:$0xff]
      %v1204 = vld [vmem:[%s654 + $0x52] sm:$0xff]
      %v1205 = vld [vmem:[%s654 + $0x62] sm:$0xff]
      %v1206 = vld [vmem:[%s654 + $0x6a] sm:$0xff]
      %v1207 = vld [vmem:[%s654 + $0x7a] sm:$0xff]
      %v1208 = vld [vmem:[%s654 + $0x82] sm:$0xff]
      %v1209 = vld [vmem:[%s654 + $0x92] sm:$0xff]
      %v1210 = vld [vmem:[%s654 + $0x9a] sm:$0xff]
      %v1211 = vld [vmem:[%s654 + $0xaa] sm:$0xff]
      %v1212 = vld [vmem:[%s654 + $0xb2] sm:$0xff]
      %v1213 = vld [vmem:[%s654 + $0xc2] sm:$0xff]
      %v1214 = vld [vmem:[%s654 + $0xca] sm:$0xff]
      %v1215 = vld [vmem:[%s654 + $0xda] sm:$0xff]
      %v1216 = vld [vmem:[%s654 + $0xe2] sm:$0xff]
      %v1217 = vld [vmem:[%s654 + $0xf2] sm:$0xff]
      %v1218 = vld [vmem:[%s654 + $0xfa] sm:$0xff]
      %v1219 = vld [vmem:[%s654 + $0x10a] sm:$0xff]
      %v1220 = vld [vmem:[%s654 + $0x112] sm:$0xff]
      %v1221 = vld [vmem:[%s654 + $0x122] sm:$0xff]
      %v1222 = vld [vmem:[%s654 + $0x12a] sm:$0xff]
      %v1223 = vld [vmem:[%s654 + $0x13a] sm:$0xff]
      %v1224 = vld [vmem:[%s654 + $0x142] sm:$0xff]
      %v1225 = vld [vmem:[%s654 + $0x152] sm:$0xff]
      %v1226 = vld [vmem:[%s654 + $0x15a] sm:$0xff]
      %v1227 = vld [vmem:[%s654 + $0x16a] sm:$0xff]
      %v1228 = vld [vmem:[%s654 + $0x172] sm:$0xff]
      %v1229 = vlaneseq
      %v1230 = vshrl.u32 %v1229, 7
      %v1231 = vsub.s32 5, %v1230
      %v1232 = vrot.slane %v720, %v1231
      %v1233 = vmul.f32 %v1197, %v1232
      %v1234 = vmul.f32 %v1198, %v1232
      %v1235 = vmul.f32 %v1199, %v1232
      %v1236 = vmul.f32 %v1200, %v1232
      %v1237 = vmul.f32 %v1201, %v1232
      %v1238 = vmul.f32 %v1202, %v1232
      %v1239 = vmul.f32 %v1203, %v1232
      %v1240 = vmul.f32 %v1204, %v1232
      %v1241 = vmul.f32 %v1205, %v1232
      %v1242 = vmul.f32 %v1206, %v1232
      %v1243 = vmul.f32 %v1207, %v1232
      %v1244 = vmul.f32 %v1208, %v1232
      %v1245 = vmul.f32 %v1209, %v1232
      %v1246 = vmul.f32 %v1210, %v1232
      %v1247 = vmul.f32 %v1211, %v1232
      %v1248 = vmul.f32 %v1212, %v1232
      %v1249 = vmul.f32 %v1213, %v1232
      %v1250 = vmul.f32 %v1214, %v1232
      %v1251 = vmul.f32 %v1215, %v1232
      %v1252 = vmul.f32 %v1216, %v1232
      %v1253 = vmul.f32 %v1217, %v1232
      %v1254 = vmul.f32 %v1218, %v1232
      %v1255 = vmul.f32 %v1219, %v1232
      %v1256 = vmul.f32 %v1220, %v1232
      %v1257 = vmul.f32 %v1221, %v1232
      %v1258 = vmul.f32 %v1222, %v1232
      %v1259 = vmul.f32 %v1223, %v1232
      %v1260 = vmul.f32 %v1224, %v1232
      %v1261 = vmul.f32 %v1225, %v1232
      %v1262 = vmul.f32 %v1226, %v1232
      %v1263 = vmul.f32 %v1227, %v1232
      %v1264 = vmul.f32 %v1228, %v1232
      %v1265 = vadd.f32 %v1165, %v1233
      %v1266 = vadd.f32 %v1166, %v1234
      %v1267 = vadd.f32 %v1167, %v1235
      %v1268 = vadd.f32 %v1168, %v1236
      %v1269 = vadd.f32 %v1169, %v1237
      %v1270 = vadd.f32 %v1170, %v1238
      %v1271 = vadd.f32 %v1171, %v1239
      %v1272 = vadd.f32 %v1172, %v1240
      %v1273 = vadd.f32 %v1173, %v1241
      %v1274 = vadd.f32 %v1174, %v1242
      %v1275 = vadd.f32 %v1175, %v1243
      %v1276 = vadd.f32 %v1176, %v1244
      %v1277 = vadd.f32 %v1177, %v1245
      %v1278 = vadd.f32 %v1178, %v1246
      %v1279 = vadd.f32 %v1179, %v1247
      %v1280 = vadd.f32 %v1180, %v1248
      %v1281 = vadd.f32 %v1181, %v1249
      %v1282 = vadd.f32 %v1182, %v1250
      %v1283 = vadd.f32 %v1183, %v1251
      %v1284 = vadd.f32 %v1184, %v1252
      %v1285 = vadd.f32 %v1185, %v1253
      %v1286 = vadd.f32 %v1186, %v1254
      %v1287 = vadd.f32 %v1187, %v1255
      %v1288 = vadd.f32 %v1188, %v1256
      %v1289 = vadd.f32 %v1189, %v1257
      %v1290 = vadd.f32 %v1190, %v1258
      %v1291 = vadd.f32 %v1191, %v1259
      %v1292 = vadd.f32 %v1192, %v1260
      %v1293 = vadd.f32 %v1193, %v1261
      %v1294 = vadd.f32 %v1194, %v1262
      %v1295 = vadd.f32 %v1195, %v1263
      %v1296 = vadd.f32 %v1196, %v1264
      %s1297 = scalar_lea.vmem [#allocation2], 48
      %v1298 = vld [vmem:[%s1297] sm:$0xff]
      %v1299 = vld [vmem:[%s1297 + $0x8] sm:$0xff]
      %v1300 = vld [vmem:[%s1297 + $0x18] sm:$0xff]
      %v1301 = vld [vmem:[%s1297 + $0x20] sm:$0xff]
      %v1302 = vld [vmem:[%s1297 + $0x30] sm:$0xff]
      %v1303 = vld [vmem:[%s1297 + $0x38] sm:$0xff]
      %v1304 = vld [vmem:[%s1297 + $0x48] sm:$0xff]
      %v1305 = vld [vmem:[%s1297 + $0x50] sm:$0xff]
      %v1306 = vld [vmem:[%s1297 + $0x60] sm:$0xff]
      %v1307 = vld [vmem:[%s1297 + $0x68] sm:$0xff]
      %v1308 = vld [vmem:[%s1297 + $0x78] sm:$0xff]
      %v1309 = vld [vmem:[%s1297 + $0x80] sm:$0xff]
      %v1310 = vld [vmem:[%s1297 + $0x90] sm:$0xff]
      %v1311 = vld [vmem:[%s1297 + $0x98] sm:$0xff]
      %v1312 = vld [vmem:[%s1297 + $0xa8] sm:$0xff]
      %v1313 = vld [vmem:[%s1297 + $0xb0] sm:$0xff]
      %v1314 = vld [vmem:[%s1297 + $0xc0] sm:$0xff]
      %v1315 = vld [vmem:[%s1297 + $0xc8] sm:$0xff]
      %v1316 = vld [vmem:[%s1297 + $0xd8] sm:$0xff]
      %v1317 = vld [vmem:[%s1297 + $0xe0] sm:$0xff]
      %v1318 = vld [vmem:[%s1297 + $0xf0] sm:$0xff]
      %v1319 = vld [vmem:[%s1297 + $0xf8] sm:$0xff]
      %v1320 = vld [vmem:[%s1297 + $0x108] sm:$0xff]
      %v1321 = vld [vmem:[%s1297 + $0x110] sm:$0xff]
      %v1322 = vld [vmem:[%s1297 + $0x120] sm:$0xff]
      %v1323 = vld [vmem:[%s1297 + $0x128] sm:$0xff]
      %v1324 = vld [vmem:[%s1297 + $0x138] sm:$0xff]
      %v1325 = vld [vmem:[%s1297 + $0x140] sm:$0xff]
      %v1326 = vld [vmem:[%s1297 + $0x150] sm:$0xff]
      %v1327 = vld [vmem:[%s1297 + $0x158] sm:$0xff]
      %v1328 = vld [vmem:[%s1297 + $0x168] sm:$0xff]
      %v1329 = vld [vmem:[%s1297 + $0x170] sm:$0xff]
      %v1330 = vlaneseq
      %v1331 = vshrl.u32 %v1330, 7
      %v1332 = vsub.s32 6, %v1331
      %v1333 = vrot.slane %v720, %v1332
      %v1334 = vmul.f32 %v1298, %v1333
      %v1335 = vmul.f32 %v1299, %v1333
      %v1336 = vmul.f32 %v1300, %v1333
      %v1337 = vmul.f32 %v1301, %v1333
      %v1338 = vmul.f32 %v1302, %v1333
      %v1339 = vmul.f32 %v1303, %v1333
      %v1340 = vmul.f32 %v1304, %v1333
      %v1341 = vmul.f32 %v1305, %v1333
      %v1342 = vmul.f32 %v1306, %v1333
      %v1343 = vmul.f32 %v1307, %v1333
      %v1344 = vmul.f32 %v1308, %v1333
      %v1345 = vmul.f32 %v1309, %v1333
      %v1346 = vmul.f32 %v1310, %v1333
      %v1347 = vmul.f32 %v1311, %v1333
      %v1348 = vmul.f32 %v1312, %v1333
      %v1349 = vmul.f32 %v1313, %v1333
      %v1350 = vmul.f32 %v1314, %v1333
      %v1351 = vmul.f32 %v1315, %v1333
      %v1352 = vmul.f32 %v1316, %v1333
      %v1353 = vmul.f32 %v1317, %v1333
      %v1354 = vmul.f32 %v1318, %v1333
      %v1355 = vmul.f32 %v1319, %v1333
      %v1356 = vmul.f32 %v1320, %v1333
      %v1357 = vmul.f32 %v1321, %v1333
      %v1358 = vmul.f32 %v1322, %v1333
      %v1359 = vmul.f32 %v1323, %v1333
      %v1360 = vmul.f32 %v1324, %v1333
      %v1361 = vmul.f32 %v1325, %v1333
      %v1362 = vmul.f32 %v1326, %v1333
      %v1363 = vmul.f32 %v1327, %v1333
      %v1364 = vmul.f32 %v1328, %v1333
      %v1365 = vmul.f32 %v1329, %v1333
      %v1366 = vadd.f32 %v1265, %v1334
      %v1367 = vadd.f32 %v1266, %v1335
      %v1368 = vadd.f32 %v1267, %v1336
      %v1369 = vadd.f32 %v1268, %v1337
      %v1370 = vadd.f32 %v1269, %v1338
      %v1371 = vadd.f32 %v1270, %v1339
      %v1372 = vadd.f32 %v1271, %v1340
      %v1373 = vadd.f32 %v1272, %v1341
      %v1374 = vadd.f32 %v1273, %v1342
      %v1375 = vadd.f32 %v1274, %v1343
      %v1376 = vadd.f32 %v1275, %v1344
      %v1377 = vadd.f32 %v1276, %v1345
      %v1378 = vadd.f32 %v1277, %v1346
      %v1379 = vadd.f32 %v1278, %v1347
      %v1380 = vadd.f32 %v1279, %v1348
      %v1381 = vadd.f32 %v1280, %v1349
      %v1382 = vadd.f32 %v1281, %v1350
      %v1383 = vadd.f32 %v1282, %v1351
      %v1384 = vadd.f32 %v1283, %v1352
      %v1385 = vadd.f32 %v1284, %v1353
      %v1386 = vadd.f32 %v1285, %v1354
      %v1387 = vadd.f32 %v1286, %v1355
      %v1388 = vadd.f32 %v1287, %v1356
      %v1389 = vadd.f32 %v1288, %v1357
      %v1390 = vadd.f32 %v1289, %v1358
      %v1391 = vadd.f32 %v1290, %v1359
      %v1392 = vadd.f32 %v1291, %v1360
      %v1393 = vadd.f32 %v1292, %v1361
      %v1394 = vadd.f32 %v1293, %v1362
      %v1395 = vadd.f32 %v1294, %v1363
      %v1396 = vadd.f32 %v1295, %v1364
      %v1397 = vadd.f32 %v1296, %v1365
      %v1398 = vld [vmem:[%s1297 + $0x1] sm:$0xff]
      %v1399 = vld [vmem:[%s1297 + $0x9] sm:$0xff]
      %v1400 = vld [vmem:[%s1297 + $0x19] sm:$0xff]
      %v1401 = vld [vmem:[%s1297 + $0x21] sm:$0xff]
      %v1402 = vld [vmem:[%s1297 + $0x31] sm:$0xff]
      %v1403 = vld [vmem:[%s1297 + $0x39] sm:$0xff]
      %v1404 = vld [vmem:[%s1297 + $0x49] sm:$0xff]
      %v1405 = vld [vmem:[%s1297 + $0x51] sm:$0xff]
      %v1406 = vld [vmem:[%s1297 + $0x61] sm:$0xff]
      %v1407 = vld [vmem:[%s1297 + $0x69] sm:$0xff]
      %v1408 = vld [vmem:[%s1297 + $0x79] sm:$0xff]
      %v1409 = vld [vmem:[%s1297 + $0x81] sm:$0xff]
      %v1410 = vld [vmem:[%s1297 + $0x91] sm:$0xff]
      %v1411 = vld [vmem:[%s1297 + $0x99] sm:$0xff]
      %v1412 = vld [vmem:[%s1297 + $0xa9] sm:$0xff]
      %v1413 = vld [vmem:[%s1297 + $0xb1] sm:$0xff]
      %v1414 = vld [vmem:[%s1297 + $0xc1] sm:$0xff]
      %v1415 = vld [vmem:[%s1297 + $0xc9] sm:$0xff]
      %v1416 = vld [vmem:[%s1297 + $0xd9] sm:$0xff]
      %v1417 = vld [vmem:[%s1297 + $0xe1] sm:$0xff]
      %v1418 = vld [vmem:[%s1297 + $0xf1] sm:$0xff]
      %v1419 = vld [vmem:[%s1297 + $0xf9] sm:$0xff]
      %v1420 = vld [vmem:[%s1297 + $0x109] sm:$0xff]
      %v1421 = vld [vmem:[%s1297 + $0x111] sm:$0xff]
      %v1422 = vld [vmem:[%s1297 + $0x121] sm:$0xff]
      %v1423 = vld [vmem:[%s1297 + $0x129] sm:$0xff]
      %v1424 = vld [vmem:[%s1297 + $0x139] sm:$0xff]
      %v1425 = vld [vmem:[%s1297 + $0x141] sm:$0xff]
      %v1426 = vld [vmem:[%s1297 + $0x151] sm:$0xff]
      %v1427 = vld [vmem:[%s1297 + $0x159] sm:$0xff]
      %v1428 = vld [vmem:[%s1297 + $0x169] sm:$0xff]
      %v1429 = vld [vmem:[%s1297 + $0x171] sm:$0xff]
      %v1430 = vlaneseq
      %v1431 = vshrl.u32 %v1430, 7
      %v1432 = vsub.s32 7, %v1431
      %v1433 = vrot.slane %v720, %v1432
      %v1434 = vmul.f32 %v1398, %v1433
      %v1435 = vmul.f32 %v1399, %v1433
      %v1436 = vmul.f32 %v1400, %v1433
      %v1437 = vmul.f32 %v1401, %v1433
      %v1438 = vmul.f32 %v1402, %v1433
      %v1439 = vmul.f32 %v1403, %v1433
      %v1440 = vmul.f32 %v1404, %v1433
      %v1441 = vmul.f32 %v1405, %v1433
      %v1442 = vmul.f32 %v1406, %v1433
      %v1443 = vmul.f32 %v1407, %v1433
      %v1444 = vmul.f32 %v1408, %v1433
      %v1445 = vmul.f32 %v1409, %v1433
      %v1446 = vmul.f32 %v1410, %v1433
      %v1447 = vmul.f32 %v1411, %v1433
      %v1448 = vmul.f32 %v1412, %v1433
      %v1449 = vmul.f32 %v1413, %v1433
      %v1450 = vmul.f32 %v1414, %v1433
      %v1451 = vmul.f32 %v1415, %v1433
      %v1452 = vmul.f32 %v1416, %v1433
      %v1453 = vmul.f32 %v1417, %v1433
      %v1454 = vmul.f32 %v1418, %v1433
      %v1455 = vmul.f32 %v1419, %v1433
      %v1456 = vmul.f32 %v1420, %v1433
      %v1457 = vmul.f32 %v1421, %v1433
      %v1458 = vmul.f32 %v1422, %v1433
      %v1459 = vmul.f32 %v1423, %v1433
      %v1460 = vmul.f32 %v1424, %v1433
      %v1461 = vmul.f32 %v1425, %v1433
      %v1462 = vmul.f32 %v1426, %v1433
      %v1463 = vmul.f32 %v1427, %v1433
      %v1464 = vmul.f32 %v1428, %v1433
      %v1465 = vmul.f32 %v1429, %v1433
      %v1466 = vadd.f32 %v1366, %v1434
      %v1467 = vadd.f32 %v1367, %v1435
      %v1468 = vadd.f32 %v1368, %v1436
      %v1469 = vadd.f32 %v1369, %v1437
      %v1470 = vadd.f32 %v1370, %v1438
      %v1471 = vadd.f32 %v1371, %v1439
      %v1472 = vadd.f32 %v1372, %v1440
      %v1473 = vadd.f32 %v1373, %v1441
      %v1474 = vadd.f32 %v1374, %v1442
      %v1475 = vadd.f32 %v1375, %v1443
      %v1476 = vadd.f32 %v1376, %v1444
      %v1477 = vadd.f32 %v1377, %v1445
      %v1478 = vadd.f32 %v1378, %v1446
      %v1479 = vadd.f32 %v1379, %v1447
      %v1480 = vadd.f32 %v1380, %v1448
      %v1481 = vadd.f32 %v1381, %v1449
      %v1482 = vadd.f32 %v1382, %v1450
      %v1483 = vadd.f32 %v1383, %v1451
      %v1484 = vadd.f32 %v1384, %v1452
      %v1485 = vadd.f32 %v1385, %v1453
      %v1486 = vadd.f32 %v1386, %v1454
      %v1487 = vadd.f32 %v1387, %v1455
      %v1488 = vadd.f32 %v1388, %v1456
      %v1489 = vadd.f32 %v1389, %v1457
      %v1490 = vadd.f32 %v1390, %v1458
      %v1491 = vadd.f32 %v1391, %v1459
      %v1492 = vadd.f32 %v1392, %v1460
      %v1493 = vadd.f32 %v1393, %v1461
      %v1494 = vadd.f32 %v1394, %v1462
      %v1495 = vadd.f32 %v1395, %v1463
      %v1496 = vadd.f32 %v1396, %v1464
      %v1497 = vadd.f32 %v1397, %v1465
      %v1498 = vld [vmem:[%s1297 + $0x2] sm:$0xff]
      %v1499 = vld [vmem:[%s1297 + $0xa] sm:$0xff]
      %v1500 = vld [vmem:[%s1297 + $0x1a] sm:$0xff]
      %v1501 = vld [vmem:[%s1297 + $0x22] sm:$0xff]
      %v1502 = vld [vmem:[%s1297 + $0x32] sm:$0xff]
      %v1503 = vld [vmem:[%s1297 + $0x3a] sm:$0xff]
      %v1504 = vld [vmem:[%s1297 + $0x4a] sm:$0xff]
      %v1505 = vld [vmem:[%s1297 + $0x52] sm:$0xff]
      %v1506 = vld [vmem:[%s1297 + $0x62] sm:$0xff]
      %v1507 = vld [vmem:[%s1297 + $0x6a] sm:$0xff]
      %v1508 = vld [vmem:[%s1297 + $0x7a] sm:$0xff]
      %v1509 = vld [vmem:[%s1297 + $0x82] sm:$0xff]
      %v1510 = vld [vmem:[%s1297 + $0x92] sm:$0xff]
      %v1511 = vld [vmem:[%s1297 + $0x9a] sm:$0xff]
      %v1512 = vld [vmem:[%s1297 + $0xaa] sm:$0xff]
      %v1513 = vld [vmem:[%s1297 + $0xb2] sm:$0xff]
      %v1514 = vld [vmem:[%s1297 + $0xc2] sm:$0xff]
      %v1515 = vld [vmem:[%s1297 + $0xca] sm:$0xff]
      %v1516 = vld [vmem:[%s1297 + $0xda] sm:$0xff]
      %v1517 = vld [vmem:[%s1297 + $0xe2] sm:$0xff]
      %v1518 = vld [vmem:[%s1297 + $0xf2] sm:$0xff]
      %v1519 = vld [vmem:[%s1297 + $0xfa] sm:$0xff]
      %v1520 = vld [vmem:[%s1297 + $0x10a] sm:$0xff]
      %v1521 = vld [vmem:[%s1297 + $0x112] sm:$0xff]
      %v1522 = vld [vmem:[%s1297 + $0x122] sm:$0xff]
      %v1523 = vld [vmem:[%s1297 + $0x12a] sm:$0xff]
      %v1524 = vld [vmem:[%s1297 + $0x13a] sm:$0xff]
      %v1525 = vld [vmem:[%s1297 + $0x142] sm:$0xff]
      %v1526 = vld [vmem:[%s1297 + $0x152] sm:$0xff]
      %v1527 = vld [vmem:[%s1297 + $0x15a] sm:$0xff]
      %v1528 = vld [vmem:[%s1297 + $0x16a] sm:$0xff]
      %v1529 = vld [vmem:[%s1297 + $0x172] sm:$0xff]
      %v1530 = vlaneseq
      %v1531 = vshrl.u32 %v1530, 7
      %v1532 = vsub.s32 0, %v1531
      %v1533 = vrot.slane %v721, %v1532
      %v1534 = vmul.f32 %v1498, %v1533
      %v1535 = vmul.f32 %v1499, %v1533
      %v1536 = vmul.f32 %v1500, %v1533
      %v1537 = vmul.f32 %v1501, %v1533
      %v1538 = vmul.f32 %v1502, %v1533
      %v1539 = vmul.f32 %v1503, %v1533
      %v1540 = vmul.f32 %v1504, %v1533
      %v1541 = vmul.f32 %v1505, %v1533
      %v1542 = vmul.f32 %v1506, %v1533
      %v1543 = vmul.f32 %v1507, %v1533
      %v1544 = vmul.f32 %v1508, %v1533
      %v1545 = vmul.f32 %v1509, %v1533
      %v1546 = vmul.f32 %v1510, %v1533
      %v1547 = vmul.f32 %v1511, %v1533
      %v1548 = vmul.f32 %v1512, %v1533
      %v1549 = vmul.f32 %v1513, %v1533
      %v1550 = vmul.f32 %v1514, %v1533
      %v1551 = vmul.f32 %v1515, %v1533
      %v1552 = vmul.f32 %v1516, %v1533
      %v1553 = vmul.f32 %v1517, %v1533
      %v1554 = vmul.f32 %v1518, %v1533
      %v1555 = vmul.f32 %v1519, %v1533
      %v1556 = vmul.f32 %v1520, %v1533
      %v1557 = vmul.f32 %v1521, %v1533
      %v1558 = vmul.f32 %v1522, %v1533
      %v1559 = vmul.f32 %v1523, %v1533
      %v1560 = vmul.f32 %v1524, %v1533
      %v1561 = vmul.f32 %v1525, %v1533
      %v1562 = vmul.f32 %v1526, %v1533
      %v1563 = vmul.f32 %v1527, %v1533
      %v1564 = vmul.f32 %v1528, %v1533
      %v1565 = vmul.f32 %v1529, %v1533
      %v1566 = vadd.f32 %v1466, %v1534
      %v1567 = vadd.f32 %v1467, %v1535
      %v1568 = vadd.f32 %v1468, %v1536
      %v1569 = vadd.f32 %v1469, %v1537
      %v1570 = vadd.f32 %v1470, %v1538
      %v1571 = vadd.f32 %v1471, %v1539
      %v1572 = vadd.f32 %v1472, %v1540
      %v1573 = vadd.f32 %v1473, %v1541
      %v1574 = vadd.f32 %v1474, %v1542
      %v1575 = vadd.f32 %v1475, %v1543
      %v1576 = vadd.f32 %v1476, %v1544
      %v1577 = vadd.f32 %v1477, %v1545
      %v1578 = vadd.f32 %v1478, %v1546
      %v1579 = vadd.f32 %v1479, %v1547
      %v1580 = vadd.f32 %v1480, %v1548
      %v1581 = vadd.f32 %v1481, %v1549
      %v1582 = vadd.f32 %v1482, %v1550
      %v1583 = vadd.f32 %v1483, %v1551
      %v1584 = vadd.f32 %v1484, %v1552
      %v1585 = vadd.f32 %v1485, %v1553
      %v1586 = vadd.f32 %v1486, %v1554
      %v1587 = vadd.f32 %v1487, %v1555
      %v1588 = vadd.f32 %v1488, %v1556
      %v1589 = vadd.f32 %v1489, %v1557
      %v1590 = vadd.f32 %v1490, %v1558
      %v1591 = vadd.f32 %v1491, %v1559
      %v1592 = vadd.f32 %v1492, %v1560
      %v1593 = vadd.f32 %v1493, %v1561
      %v1594 = vadd.f32 %v1494, %v1562
      %v1595 = vadd.f32 %v1495, %v1563
      %v1596 = vadd.f32 %v1496, %v1564
      %v1597 = vadd.f32 %v1497, %v1565
      %v1598 = vmul.f32 %v1566, 0.5
      %v1599 = vmul.f32 %v1567, 0.5
      %v1600 = vmul.f32 %v1568, 0.5
      %v1601 = vmul.f32 %v1569, 0.5
      %v1602 = vmul.f32 %v1570, 0.5
      %v1603 = vmul.f32 %v1571, 0.5
      %v1604 = vmul.f32 %v1572, 0.5
      %v1605 = vmul.f32 %v1573, 0.5
      %v1606 = vmul.f32 %v1574, 0.5
      %v1607 = vmul.f32 %v1575, 0.5
      %v1608 = vmul.f32 %v1576, 0.5
      %v1609 = vmul.f32 %v1577, 0.5
      %v1610 = vmul.f32 %v1578, 0.5
      %v1611 = vmul.f32 %v1579, 0.5
      %v1612 = vmul.f32 %v1580, 0.5
      %v1613 = vmul.f32 %v1581, 0.5
      %v1614 = vmul.f32 %v1582, 0.5
      %v1615 = vmul.f32 %v1583, 0.5
      %v1616 = vmul.f32 %v1584, 0.5
      %v1617 = vmul.f32 %v1585, 0.5
      %v1618 = vmul.f32 %v1586, 0.5
      %v1619 = vmul.f32 %v1587, 0.5
      %v1620 = vmul.f32 %v1588, 0.5
      %v1621 = vmul.f32 %v1589, 0.5
      %v1622 = vmul.f32 %v1590, 0.5
      %v1623 = vmul.f32 %v1591, 0.5
      %v1624 = vmul.f32 %v1592, 0.5
      %v1625 = vmul.f32 %v1593, 0.5
      %v1626 = vmul.f32 %v1594, 0.5
      %v1627 = vmul.f32 %v1595, 0.5
      %v1628 = vmul.f32 %v1596, 0.5
      %v1629 = vmul.f32 %v1597, 0.5
      %v1630 = vmul.f32 %v1566, 0.044715
      %v1631 = vmul.f32 %v1567, 0.044715
      %v1632 = vmul.f32 %v1568, 0.044715
      %v1633 = vmul.f32 %v1569, 0.044715
      %v1634 = vmul.f32 %v1570, 0.044715
      %v1635 = vmul.f32 %v1571, 0.044715
      %v1636 = vmul.f32 %v1572, 0.044715
      %v1637 = vmul.f32 %v1573, 0.044715
      %v1638 = vmul.f32 %v1574, 0.044715
      %v1639 = vmul.f32 %v1575, 0.044715
      %v1640 = vmul.f32 %v1576, 0.044715
      %v1641 = vmul.f32 %v1577, 0.044715
      %v1642 = vmul.f32 %v1578, 0.044715
      %v1643 = vmul.f32 %v1579, 0.044715
      %v1644 = vmul.f32 %v1580, 0.044715
      %v1645 = vmul.f32 %v1581, 0.044715
      %v1646 = vmul.f32 %v1582, 0.044715
      %v1647 = vmul.f32 %v1583, 0.044715
      %v1648 = vmul.f32 %v1584, 0.044715
      %v1649 = vmul.f32 %v1585, 0.044715
      %v1650 = vmul.f32 %v1586, 0.044715
      %v1651 = vmul.f32 %v1587, 0.044715
      %v1652 = vmul.f32 %v1588, 0.044715
      %v1653 = vmul.f32 %v1589, 0.044715
      %v1654 = vmul.f32 %v1590, 0.044715
      %v1655 = vmul.f32 %v1591, 0.044715
      %v1656 = vmul.f32 %v1592, 0.044715
      %v1657 = vmul.f32 %v1593, 0.044715
      %v1658 = vmul.f32 %v1594, 0.044715
      %v1659 = vmul.f32 %v1595, 0.044715
      %v1660 = vmul.f32 %v1596, 0.044715
      %v1661 = vmul.f32 %v1597, 0.044715
      %v1662 = vmul.f32 %v1630, %v1566
      %v1663 = vmul.f32 %v1631, %v1567
      %v1664 = vmul.f32 %v1632, %v1568
      %v1665 = vmul.f32 %v1633, %v1569
      %v1666 = vmul.f32 %v1634, %v1570
      %v1667 = vmul.f32 %v1635, %v1571
      %v1668 = vmul.f32 %v1636, %v1572
      %v1669 = vmul.f32 %v1637, %v1573
      %v1670 = vmul.f32 %v1638, %v1574
      %v1671 = vmul.f32 %v1639, %v1575
      %v1672 = vmul.f32 %v1640, %v1576
      %v1673 = vmul.f32 %v1641, %v1577
      %v1674 = vmul.f32 %v1642, %v1578
      %v1675 = vmul.f32 %v1643, %v1579
      %v1676 = vmul.f32 %v1644, %v1580
      %v1677 = vmul.f32 %v1645, %v1581
      %v1678 = vmul.f32 %v1646, %v1582
      %v1679 = vmul.f32 %v1647, %v1583
      %v1680 = vmul.f32 %v1648, %v1584
      %v1681 = vmul.f32 %v1649, %v1585
      %v1682 = vmul.f32 %v1650, %v1586
      %v1683 = vmul.f32 %v1651, %v1587
      %v1684 = vmul.f32 %v1652, %v1588
      %v1685 = vmul.f32 %v1653, %v1589
      %v1686 = vmul.f32 %v1654, %v1590
      %v1687 = vmul.f32 %v1655, %v1591
      %v1688 = vmul.f32 %v1656, %v1592
      %v1689 = vmul.f32 %v1657, %v1593
      %v1690 = vmul.f32 %v1658, %v1594
      %v1691 = vmul.f32 %v1659, %v1595
      %v1692 = vmul.f32 %v1660, %v1596
      %v1693 = vmul.f32 %v1661, %v1597
      %v1694 = vmul.f32 %v1662, %v1566
      %v1695 = vmul.f32 %v1663, %v1567
      %v1696 = vmul.f32 %v1664, %v1568
      %v1697 = vmul.f32 %v1665, %v1569
      %v1698 = vmul.f32 %v1666, %v1570
      %v1699 = vmul.f32 %v1667, %v1571
      %v1700 = vmul.f32 %v1668, %v1572
      %v1701 = vmul.f32 %v1669, %v1573
      %v1702 = vmul.f32 %v1670, %v1574
      %v1703 = vmul.f32 %v1671, %v1575
      %v1704 = vmul.f32 %v1672, %v1576
      %v1705 = vmul.f32 %v1673, %v1577
      %v1706 = vmul.f32 %v1674, %v1578
      %v1707 = vmul.f32 %v1675, %v1579
      %v1708 = vmul.f32 %v1676, %v1580
      %v1709 = vmul.f32 %v1677, %v1581
      %v1710 = vmul.f32 %v1678, %v1582
      %v1711 = vmul.f32 %v1679, %v1583
      %v1712 = vmul.f32 %v1680, %v1584
      %v1713 = vmul.f32 %v1681, %v1585
      %v1714 = vmul.f32 %v1682, %v1586
      %v1715 = vmul.f32 %v1683, %v1587
      %v1716 = vmul.f32 %v1684, %v1588
      %v1717 = vmul.f32 %v1685, %v1589
      %v1718 = vmul.f32 %v1686, %v1590
      %v1719 = vmul.f32 %v1687, %v1591
      %v1720 = vmul.f32 %v1688, %v1592
      %v1721 = vmul.f32 %v1689, %v1593
      %v1722 = vmul.f32 %v1690, %v1594
      %v1723 = vmul.f32 %v1691, %v1595
      %v1724 = vmul.f32 %v1692, %v1596
      %v1725 = vmul.f32 %v1693, %v1597
      %v1726 = vadd.f32 %v1566, %v1694
      %v1727 = vadd.f32 %v1567, %v1695
      %v1728 = vadd.f32 %v1568, %v1696
      %v1729 = vadd.f32 %v1569, %v1697
      %v1730 = vadd.f32 %v1570, %v1698
      %v1731 = vadd.f32 %v1571, %v1699
      %v1732 = vadd.f32 %v1572, %v1700
      %v1733 = vadd.f32 %v1573, %v1701
      %v1734 = vadd.f32 %v1574, %v1702
      %v1735 = vadd.f32 %v1575, %v1703
      %v1736 = vadd.f32 %v1576, %v1704
      %v1737 = vadd.f32 %v1577, %v1705
      %v1738 = vadd.f32 %v1578, %v1706
      %v1739 = vadd.f32 %v1579, %v1707
      %v1740 = vadd.f32 %v1580, %v1708
      %v1741 = vadd.f32 %v1581, %v1709
      %v1742 = vadd.f32 %v1582, %v1710
      %v1743 = vadd.f32 %v1583, %v1711
      %v1744 = vadd.f32 %v1584, %v1712
      %v1745 = vadd.f32 %v1585, %v1713
      %v1746 = vadd.f32 %v1586, %v1714
      %v1747 = vadd.f32 %v1587, %v1715
      %v1748 = vadd.f32 %v1588, %v1716
      %v1749 = vadd.f32 %v1589, %v1717
      %v1750 = vadd.f32 %v1590, %v1718
      %v1751 = vadd.f32 %v1591, %v1719
      %v1752 = vadd.f32 %v1592, %v1720
      %v1753 = vadd.f32 %v1593, %v1721
      %v1754 = vadd.f32 %v1594, %v1722
      %v1755 = vadd.f32 %v1595, %v1723
      %v1756 = vadd.f32 %v1596, %v1724
      %v1757 = vadd.f32 %v1597, %v1725
      %v1758 = vmul.f32 %v1726, 0.7978846
      %v1759 = vmul.f32 %v1727, 0.7978846
      %v1760 = vmul.f32 %v1728, 0.7978846
      %v1761 = vmul.f32 %v1729, 0.7978846
      %v1762 = vmul.f32 %v1730, 0.7978846
      %v1763 = vmul.f32 %v1731, 0.7978846
      %v1764 = vmul.f32 %v1732, 0.7978846
      %v1765 = vmul.f32 %v1733, 0.7978846
      %v1766 = vmul.f32 %v1734, 0.7978846
      %v1767 = vmul.f32 %v1735, 0.7978846
      %v1768 = vmul.f32 %v1736, 0.7978846
      %v1769 = vmul.f32 %v1737, 0.7978846
      %v1770 = vmul.f32 %v1738, 0.7978846
      %v1771 = vmul.f32 %v1739, 0.7978846
      %v1772 = vmul.f32 %v1740, 0.7978846
      %v1773 = vmul.f32 %v1741, 0.7978846
      %v1774 = vmul.f32 %v1742, 0.7978846
      %v1775 = vmul.f32 %v1743, 0.7978846
      %v1776 = vmul.f32 %v1744, 0.7978846
      %v1777 = vmul.f32 %v1745, 0.7978846
      %v1778 = vmul.f32 %v1746, 0.7978846
      %v1779 = vmul.f32 %v1747, 0.7978846
      %v1780 = vmul.f32 %v1748, 0.7978846
      %v1781 = vmul.f32 %v1749, 0.7978846
      %v1782 = vmul.f32 %v1750, 0.7978846
      %v1783 = vmul.f32 %v1751, 0.7978846
      %v1784 = vmul.f32 %v1752, 0.7978846
      %v1785 = vmul.f32 %v1753, 0.7978846
      %v1786 = vmul.f32 %v1754, 0.7978846
      %v1787 = vmul.f32 %v1755, 0.7978846
      %v1788 = vmul.f32 %v1756, 0.7978846
      %v1789 = vmul.f32 %v1757, 0.7978846
      %v1790 = vtanh.pop %v1758
      %v1791 = vtanh.pop %v1759
      %v1792 = vtanh.pop %v1760
      %v1793 = vtanh.pop %v1761
      %v1794 = vtanh.pop %v1762
      %v1795 = vtanh.pop %v1763
      %v1796 = vtanh.pop %v1764
      %v1797 = vtanh.pop %v1765
      %v1798 = vtanh.pop %v1766
      %v1799 = vtanh.pop %v1767
      %v1800 = vtanh.pop %v1768
      %v1801 = vtanh.pop %v1769
      %v1802 = vtanh.pop %v1770
      %v1803 = vtanh.pop %v1771
      %v1804 = vtanh.pop %v1772
      %v1805 = vtanh.pop %v1773
      %v1806 = vtanh.pop %v1774
      %v1807 = vtanh.pop %v1775
      %v1808 = vtanh.pop %v1776
      %v1809 = vtanh.pop %v1777
      %v1810 = vtanh.pop %v1778
      %v1811 = vtanh.pop %v1779
      %v1812 = vtanh.pop %v1780
      %v1813 = vtanh.pop %v1781
      %v1814 = vtanh.pop %v1782
      %v1815 = vtanh.pop %v1783
      %v1816 = vtanh.pop %v1784
      %v1817 = vtanh.pop %v1785
      %v1818 = vtanh.pop %v1786
      %v1819 = vtanh.pop %v1787
      %v1820 = vtanh.pop %v1788
      %v1821 = vtanh.pop %v1789
      %v1822 = vadd.f32 %v1790, 1.0
      %v1823 = vadd.f32 %v1791, 1.0
      %v1824 = vadd.f32 %v1792, 1.0
      %v1825 = vadd.f32 %v1793, 1.0
      %v1826 = vadd.f32 %v1794, 1.0
      %v1827 = vadd.f32 %v1795, 1.0
      %v1828 = vadd.f32 %v1796, 1.0
      %v1829 = vadd.f32 %v1797, 1.0
      %v1830 = vadd.f32 %v1798, 1.0
      %v1831 = vadd.f32 %v1799, 1.0
      %v1832 = vadd.f32 %v1800, 1.0
      %v1833 = vadd.f32 %v1801, 1.0
      %v1834 = vadd.f32 %v1802, 1.0
      %v1835 = vadd.f32 %v1803, 1.0
      %v1836 = vadd.f32 %v1804, 1.0
      %v1837 = vadd.f32 %v1805, 1.0
      %v1838 = vadd.f32 %v1806, 1.0
      %v1839 = vadd.f32 %v1807, 1.0
      %v1840 = vadd.f32 %v1808, 1.0
      %v1841 = vadd.f32 %v1809, 1.0
      %v1842 = vadd.f32 %v1810, 1.0
      %v1843 = vadd.f32 %v1811, 1.0
      %v1844 = vadd.f32 %v1812, 1.0
      %v1845 = vadd.f32 %v1813, 1.0
      %v1846 = vadd.f32 %v1814, 1.0
      %v1847 = vadd.f32 %v1815, 1.0
      %v1848 = vadd.f32 %v1816, 1.0
      %v1849 = vadd.f32 %v1817, 1.0
      %v1850 = vadd.f32 %v1818, 1.0
      %v1851 = vadd.f32 %v1819, 1.0
      %v1852 = vadd.f32 %v1820, 1.0
      %v1853 = vadd.f32 %v1821, 1.0
      %v1854 = vmul.f32 %v1598, %v1822
      %v1855 = vmul.f32 %v1599, %v1823
      %v1856 = vmul.f32 %v1600, %v1824
      %v1857 = vmul.f32 %v1601, %v1825
      %v1858 = vmul.f32 %v1602, %v1826
      %v1859 = vmul.f32 %v1603, %v1827
      %v1860 = vmul.f32 %v1604, %v1828
      %v1861 = vmul.f32 %v1605, %v1829
      %v1862 = vmul.f32 %v1606, %v1830
      %v1863 = vmul.f32 %v1607, %v1831
      %v1864 = vmul.f32 %v1608, %v1832
      %v1865 = vmul.f32 %v1609, %v1833
      %v1866 = vmul.f32 %v1610, %v1834
      %v1867 = vmul.f32 %v1611, %v1835
      %v1868 = vmul.f32 %v1612, %v1836
      %v1869 = vmul.f32 %v1613, %v1837
      %v1870 = vmul.f32 %v1614, %v1838
      %v1871 = vmul.f32 %v1615, %v1839
      %v1872 = vmul.f32 %v1616, %v1840
      %v1873 = vmul.f32 %v1617, %v1841
      %v1874 = vmul.f32 %v1618, %v1842
      %v1875 = vmul.f32 %v1619, %v1843
      %v1876 = vmul.f32 %v1620, %v1844
      %v1877 = vmul.f32 %v1621, %v1845
      %v1878 = vmul.f32 %v1622, %v1846
      %v1879 = vmul.f32 %v1623, %v1847
      %v1880 = vmul.f32 %v1624, %v1848
      %v1881 = vmul.f32 %v1625, %v1849
      %v1882 = vmul.f32 %v1626, %v1850
      %v1883 = vmul.f32 %v1627, %v1851
      %v1884 = vmul.f32 %v1628, %v1852
      %v1885 = vmul.f32 %v1629, %v1853
      %1918 = vrot.lane.b32.xlu0 %v1566, 120
      %v1919 = vpop.permute.xlu0 %1918
      %1920 = vrot.lane.b32.xlu0 %v1567, 120
      %v1921 = vpop.permute.xlu0 %1920
      %1922 = vrot.lane.b32.xlu0 %v1568, 120
      %v1923 = vpop.permute.xlu0 %1922
      %1924 = vrot.lane.b32.xlu0 %v1569, 120
      %v1925 = vpop.permute.xlu0 %1924
      %1926 = vrot.lane.b32.xlu0 %v1570, 120
      %v1927 = vpop.permute.xlu0 %1926
      %1928 = vrot.lane.b32.xlu0 %v1571, 120
      %v1929 = vpop.permute.xlu0 %1928
      %1930 = vrot.lane.b32.xlu0 %v1572, 120
      %v1931 = vpop.permute.xlu0 %1930
      %1932 = vrot.lane.b32.xlu0 %v1573, 120
      %v1933 = vpop.permute.xlu0 %1932
      %1934 = vrot.lane.b32.xlu0 %v1574, 120
      %v1935 = vpop.permute.xlu0 %1934
      %1936 = vrot.lane.b32.xlu0 %v1575, 120
      %v1937 = vpop.permute.xlu0 %1936
      %1938 = vrot.lane.b32.xlu0 %v1576, 120
      %v1939 = vpop.permute.xlu0 %1938
      %1940 = vrot.lane.b32.xlu0 %v1577, 120
      %v1941 = vpop.permute.xlu0 %1940
      %1942 = vrot.lane.b32.xlu0 %v1578, 120
      %v1943 = vpop.permute.xlu0 %1942
      %1944 = vrot.lane.b32.xlu0 %v1579, 120
      %v1945 = vpop.permute.xlu0 %1944
      %1946 = vrot.lane.b32.xlu0 %v1580, 120
      %v1947 = vpop.permute.xlu0 %1946
      %1948 = vrot.lane.b32.xlu0 %v1581, 120
      %v1949 = vpop.permute.xlu0 %1948
      %1950 = vrot.lane.b32.xlu0 %v1582, 120
      %v1951 = vpop.permute.xlu0 %1950
      %1952 = vrot.lane.b32.xlu0 %v1583, 120
      %v1953 = vpop.permute.xlu0 %1952
      %1954 = vrot.lane.b32.xlu0 %v1584, 120
      %v1955 = vpop.permute.xlu0 %1954
      %1956 = vrot.lane.b32.xlu0 %v1585, 120
      %v1957 = vpop.permute.xlu0 %1956
      %1958 = vrot.lane.b32.xlu0 %v1586, 120
      %v1959 = vpop.permute.xlu0 %1958
      %1960 = vrot.lane.b32.xlu0 %v1587, 120
      %v1961 = vpop.permute.xlu0 %1960
      %1962 = vrot.lane.b32.xlu0 %v1588, 120
      %v1963 = vpop.permute.xlu0 %1962
      %1964 = vrot.lane.b32.xlu0 %v1589, 120
      %v1965 = vpop.permute.xlu0 %1964
      %1966 = vrot.lane.b32.xlu0 %v1590, 120
      %v1967 = vpop.permute.xlu0 %1966
      %1968 = vrot.lane.b32.xlu0 %v1591, 120
      %v1969 = vpop.permute.xlu0 %1968
      %1970 = vrot.lane.b32.xlu0 %v1592, 120
      %v1971 = vpop.permute.xlu0 %1970
      %1972 = vrot.lane.b32.xlu0 %v1593, 120
      %v1973 = vpop.permute.xlu0 %1972
      %1974 = vrot.lane.b32.xlu0 %v1594, 120
      %v1975 = vpop.permute.xlu0 %1974
      %1976 = vrot.lane.b32.xlu0 %v1595, 120
      %v1977 = vpop.permute.xlu0 %1976
      %1978 = vrot.lane.b32.xlu0 %v1596, 120
      %v1979 = vpop.permute.xlu0 %1978
      %1980 = vrot.lane.b32.xlu0 %v1597, 120
      %v1981 = vpop.permute.xlu0 %1980
      %v2014 = vmul.f32 %v1854, %v1919
      %v2015 = vmul.f32 %v1855, %v1921
      %v2016 = vmul.f32 %v1856, %v1923
      %v2017 = vmul.f32 %v1857, %v1925
      %v2018 = vmul.f32 %v1858, %v1927
      %v2019 = vmul.f32 %v1859, %v1929
      %v2020 = vmul.f32 %v1860, %v1931
      %v2021 = vmul.f32 %v1861, %v1933
      %v2022 = vmul.f32 %v1862, %v1935
      %v2023 = vmul.f32 %v1863, %v1937
      %v2024 = vmul.f32 %v1864, %v1939
      %v2025 = vmul.f32 %v1865, %v1941
      %v2026 = vmul.f32 %v1866, %v1943
      %v2027 = vmul.f32 %v1867, %v1945
      %v2028 = vmul.f32 %v1868, %v1947
      %v2029 = vmul.f32 %v1869, %v1949
      %v2030 = vmul.f32 %v1870, %v1951
      %v2031 = vmul.f32 %v1871, %v1953
      %v2032 = vmul.f32 %v1872, %v1955
      %v2033 = vmul.f32 %v1873, %v1957
      %v2034 = vmul.f32 %v1874, %v1959
      %v2035 = vmul.f32 %v1875, %v1961
      %v2036 = vmul.f32 %v1876, %v1963
      %v2037 = vmul.f32 %v1877, %v1965
      %v2038 = vmul.f32 %v1878, %v1967
      %v2039 = vmul.f32 %v1879, %v1969
      %v2040 = vmul.f32 %v1880, %v1971
      %v2041 = vmul.f32 %v1881, %v1973
      %v2042 = vmul.f32 %v1882, %v1975
      %v2043 = vmul.f32 %v1883, %v1977
      %v2044 = vmul.f32 %v1884, %v1979
      %v2045 = vmul.f32 %v1885, %v1981
      %v2046 = vld [vmem:[%s5] sm:$0xff]
      %v2047 = vld [vmem:[%s6] sm:$0x1]
      %v2049 = vlaneseq
      %v2050 = vshrl.u32 %v2049, 7
      %v2051 = vsub.s32 0, %v2050
      %v2052 = vrot.slane %v2047, %v2051
      %vm2054 = vcmask 64512
      %v2056 = vsel %vm2054, %v2014, 0
      %v2059 = vsel %vm2054, %v2015, 0
      %v2062 = vsel %vm2054, %v2016, 0
      %v2065 = vsel %vm2054, %v2017, 0
      %v2068 = vsel %vm2054, %v2018, 0
      %v2071 = vsel %vm2054, %v2019, 0
      %v2074 = vsel %vm2054, %v2020, 0
      %v2077 = vsel %vm2054, %v2021, 0
      %v2080 = vsel %vm2054, %v2022, 0
      %v2083 = vsel %vm2054, %v2023, 0
      %v2086 = vsel %vm2054, %v2024, 0
      %v2089 = vsel %vm2054, %v2025, 0
      %v2092 = vsel %vm2054, %v2026, 0
      %v2095 = vsel %vm2054, %v2027, 0
      %v2098 = vsel %vm2054, %v2028, 0
      %v2101 = vsel %vm2054, %v2029, 0
      %v2104 = vsel %vm2054, %v2030, 0
      %v2107 = vsel %vm2054, %v2031, 0
      %v2110 = vsel %vm2054, %v2032, 0
      %v2113 = vsel %vm2054, %v2033, 0
      %v2116 = vsel %vm2054, %v2034, 0
      %v2119 = vsel %vm2054, %v2035, 0
      %v2122 = vsel %vm2054, %v2036, 0
      %v2125 = vsel %vm2054, %v2037, 0
      %v2128 = vsel %vm2054, %v2038, 0
      %v2131 = vsel %vm2054, %v2039, 0
      %v2134 = vsel %vm2054, %v2040, 0
      %v2137 = vsel %vm2054, %v2041, 0
      %v2140 = vsel %vm2054, %v2042, 0
      %v2143 = vsel %vm2054, %v2043, 0
      %v2146 = vsel %vm2054, %v2044, 0
      %v2149 = vsel %vm2054, %v2045, 0
      %2151 = vmatprep.subr.mxu0 0.0
      %2152 = vmatpush1.msra.mxu0 %v2046
      %2153 = vmatprep.subr.mxu0 0.0
      %2154 = vmatpush1.msra.mxu0 0.0
      %2155 = vmatprep.subr.mxu0 0.0
      %2156 = vmatpush1.msra.mxu0 0.0
      %2157 = vmatprep.subr.mxu0 0.0
      %2158 = vmatpush1.msra.mxu0 0.0
      %2159 = vmatprep.subr.mxu0 0.0
      %2160 = vmatpush1.msra.mxu0 0.0
      %2161 = vmatprep.subr.mxu0 0.0
      %2162 = vmatpush1.msra.mxu0 0.0
      %2163 = vmatprep.subr.mxu0 0.0
      %2164 = vmatpush1.msra.mxu0 0.0
      %2165 = vmatprep.subr.mxu0 0.0
      %2166 = vmatpush1.msra.mxu0 0.0
      %2167 = vmatprep.subr.mxu0 0.0
      %2168 = vmatpush1.msra.mxu0 0.0
      %2169 = vmatprep.subr.mxu0 0.0
      %2170 = vmatpush1.msra.mxu0 0.0
      %2171 = vmatprep.subr.mxu0 0.0
      %2172 = vmatpush1.msra.mxu0 0.0
      %2173 = vmatprep.subr.mxu0 0.0
      %2174 = vmatpush1.msra.mxu0 0.0
      %2175 = vmatprep.subr.mxu0 0.0
      %2176 = vmatpush1.msra.mxu0 0.0
      %2177 = vmatprep.subr.mxu0 0.0
      %2178 = vmatpush1.msra.mxu0 0.0
      %2179 = vmatprep.subr.mxu0 0.0
      %2180 = vmatpush1.msra.mxu0 0.0
      %2181 = vmatprep.subr.mxu0 0.0
      %2182 = vmatpush1.msra.mxu0 0.0
      %2183 = vmatprep.subr.mxu0 0.0
      %2184 = vmatpush1.msra.mxu0 0.0
      %2185 = vmatprep.subr.mxu0 0.0
      %2186 = vmatpush1.msra.mxu0 0.0
      %2187 = vmatprep.subr.mxu0 0.0
      %2188 = vmatpush1.msra.mxu0 0.0
      %2189 = vmatprep.subr.mxu0 0.0
      %2190 = vmatpush1.msra.mxu0 0.0
      %2191 = vmatprep.subr.mxu0 0.0
      %2192 = vmatpush1.msra.mxu0 0.0
      %2193 = vmatprep.subr.mxu0 0.0
      %2194 = vmatpush1.msra.mxu0 0.0
      %2195 = vmatprep.subr.mxu0 0.0
      %2196 = vmatpush1.msra.mxu0 0.0
      %2197 = vmatprep.subr.mxu0 0.0
      %2198 = vmatpush1.msra.mxu0 0.0
      %2199 = vmatprep.subr.mxu0 0.0
      %2200 = vmatpush1.msra.mxu0 0.0
      %2201 = vmatprep.subr.mxu0 0.0
      %2202 = vmatpush1.msra.mxu0 0.0
      %2203 = vmatprep.subr.mxu0 0.0
      %2204 = vmatpush1.msra.mxu0 0.0
      %2205 = vmatprep.subr.mxu0 0.0
      %2206 = vmatpush1.msra.mxu0 0.0
      %2207 = vmatprep.subr.mxu0 0.0
      %2208 = vmatpush1.msra.mxu0 0.0
      %2209 = vmatprep.subr.mxu0 0.0
      %2210 = vmatpush1.msra.mxu0 0.0
      %2211 = vmatprep.subr.mxu0 0.0
      %2212 = vmatpush1.msra.mxu0 0.0
      %2213 = vmatprep.subr.mxu0 0.0
      %2214 = vmatpush1.msra.mxu0 0.0
      %2215 = vmatprep.mubr.f32.mxu0 0.0
      %2216 = vmatmul.mubr.f32.gmra.mrb[0].mxu0 %v2056
      %v2217 = vpop.f32.mrb[0].mxu0
      %v2218 = vadd.f32 %v2052, %v2217
      %v2219 = vpop.f32.mrb[0].mxu0
      %2220 = vmatprep.mubr.f32.mxu0 0.0
      %2221 = vmatmul.mubr.f32.gmra.mrb[0].mxu0 %v2059
      %v2222 = vpop.f32.mrb[0].mxu0
      %v2223 = vadd.f32 %v2052, %v2222
      %v2224 = vpop.f32.mrb[0].mxu0
      %2225 = vmatprep.mubr.f32.mxu0 0.0
      %2226 = vmatmul.mubr.f32.gmra.mrb[0].mxu0 %v2062
      %v2227 = vpop.f32.mrb[0].mxu0
      %v2228 = vadd.f32 %v2052, %v2227
      %v2229 = vpop.f32.mrb[0].mxu0
      %2230 = vmatprep.mubr.f32.mxu0 0.0
      %2231 = vmatmul.mubr.f32.gmra.mrb[0].mxu0 %v2065
      %v2232 = vpop.f32.mrb[0].mxu0
      %v2233 = vadd.f32 %v2052, %v2232
      %v2234 = vpop.f32.mrb[0].mxu0
      %2235 = vmatprep.mubr.f32.mxu0 0.0
      %2236 = vmatmul.mubr.f32.gmra.mrb[0].mxu0 %v2068
      %v2237 = vpop.f32.mrb[0].mxu0
      %v2238 = vadd.f32 %v2052, %v2237
      %v2239 = vpop.f32.mrb[0].mxu0
      %2240 = vmatprep.mubr.f32.mxu0 0.0
      %2241 = vmatmul.mubr.f32.gmra.mrb[0].mxu0 %v2071
      %v2242 = vpop.f32.mrb[0].mxu0
      %v2243 = vadd.f32 %v2052, %v2242
      %v2244 = vpop.f32.mrb[0].mxu0
      %2245 = vmatprep.mubr.f32.mxu0 0.0
      %2246 = vmatmul.mubr.f32.gmra.mrb[0].mxu0 %v2074
      %v2247 = vpop.f32.mrb[0].mxu0
      %v2248 = vadd.f32 %v2052, %v2247
      %v2249 = vpop.f32.mrb[0].mxu0
      %2250 = vmatprep.mubr.f32.mxu0 0.0
      %2251 = vmatmul.mubr.f32.gmra.mrb[0].mxu0 %v2077
      %v2252 = vpop.f32.mrb[0].mxu0
      %v2253 = vadd.f32 %v2052, %v2252
      %v2254 = vpop.f32.mrb[0].mxu0
      %2255 = vmatprep.mubr.f32.mxu0 0.0
      %2256 = vmatmul.mubr.f32.gmra.mrb[0].mxu0 %v2080
      %v2257 = vpop.f32.mrb[0].mxu0
      %v2258 = vadd.f32 %v2052, %v2257
      %v2259 = vpop.f32.mrb[0].mxu0
      %2260 = vmatprep.mubr.f32.mxu0 0.0
      %2261 = vmatmul.mubr.f32.gmra.mrb[0].mxu0 %v2083
      %v2262 = vpop.f32.mrb[0].mxu0
      %v2263 = vadd.f32 %v2052, %v2262
      %v2264 = vpop.f32.mrb[0].mxu0
      %2265 = vmatprep.mubr.f32.mxu0 0.0
      %2266 = vmatmul.mubr.f32.gmra.mrb[0].mxu0 %v2086
      %v2267 = vpop.f32.mrb[0].mxu0
      %v2268 = vadd.f32 %v2052, %v2267
      %v2269 = vpop.f32.mrb[0].mxu0
      %2270 = vmatprep.mubr.f32.mxu0 0.0
      %2271 = vmatmul.mubr.f32.gmra.mrb[0].mxu0 %v2089
      %v2272 = vpop.f32.mrb[0].mxu0
      %v2273 = vadd.f32 %v2052, %v2272
      %v2274 = vpop.f32.mrb[0].mxu0
      %2275 = vmatprep.mubr.f32.mxu0 0.0
      %2276 = vmatmul.mubr.f32.gmra.mrb[0].mxu0 %v2092
      %v2277 = vpop.f32.mrb[0].mxu0
      %v2278 = vadd.f32 %v2052, %v2277
      %v2279 = vpop.f32.mrb[0].mxu0
      %2280 = vmatprep.mubr.f32.mxu0 0.0
      %2281 = vmatmul.mubr.f32.gmra.mrb[0].mxu0 %v2095
      %v2282 = vpop.f32.mrb[0].mxu0
      %v2283 = vadd.f32 %v2052, %v2282
      %v2284 = vpop.f32.mrb[0].mxu0
      %2285 = vmatprep.mubr.f32.mxu0 0.0
      %2286 = vmatmul.mubr.f32.gmra.mrb[0].mxu0 %v2098
      %v2287 = vpop.f32.mrb[0].mxu0
      %v2288 = vadd.f32 %v2052, %v2287
      %v2289 = vpop.f32.mrb[0].mxu0
      %2290 = vmatprep.mubr.f32.mxu0 0.0
      %2291 = vmatmul.mubr.f32.gmra.mrb[0].mxu0 %v2101
      %v2292 = vpop.f32.mrb[0].mxu0
      %v2293 = vadd.f32 %v2052, %v2292
      %v2294 = vpop.f32.mrb[0].mxu0
      %2295 = vmatprep.mubr.f32.mxu0 0.0
      %2296 = vmatmul.mubr.f32.gmra.mrb[0].mxu0 %v2104
      %v2297 = vpop.f32.mrb[0].mxu0
      %v2298 = vadd.f32 %v2052, %v2297
      %v2299 = vpop.f32.mrb[0].mxu0
      %2300 = vmatprep.mubr.f32.mxu0 0.0
      %2301 = vmatmul.mubr.f32.gmra.mrb[0].mxu0 %v2107
      %v2302 = vpop.f32.mrb[0].mxu0
      %v2303 = vadd.f32 %v2052, %v2302
      %v2304 = vpop.f32.mrb[0].mxu0
      %2305 = vmatprep.mubr.f32.mxu0 0.0
      %2306 = vmatmul.mubr.f32.gmra.mrb[0].mxu0 %v2110
      %v2307 = vpop.f32.mrb[0].mxu0
      %v2308 = vadd.f32 %v2052, %v2307
      %v2309 = vpop.f32.mrb[0].mxu0
      %2310 = vmatprep.mubr.f32.mxu0 0.0
      %2311 = vmatmul.mubr.f32.gmra.mrb[0].mxu0 %v2113
      %v2312 = vpop.f32.mrb[0].mxu0
      %v2313 = vadd.f32 %v2052, %v2312
      %v2314 = vpop.f32.mrb[0].mxu0
      %2315 = vmatprep.mubr.f32.mxu0 0.0
      %2316 = vmatmul.mubr.f32.gmra.mrb[0].mxu0 %v2116
      %v2317 = vpop.f32.mrb[0].mxu0
      %v2318 = vadd.f32 %v2052, %v2317
      %v2319 = vpop.f32.mrb[0].mxu0
      %2320 = vmatprep.mubr.f32.mxu0 0.0
      %2321 = vmatmul.mubr.f32.gmra.mrb[0].mxu0 %v2119
      %v2322 = vpop.f32.mrb[0].mxu0
      %v2323 = vadd.f32 %v2052, %v2322
      %v2324 = vpop.f32.mrb[0].mxu0
      %2325 = vmatprep.mubr.f32.mxu0 0.0
      %2326 = vmatmul.mubr.f32.gmra.mrb[0].mxu0 %v2122
      %v2327 = vpop.f32.mrb[0].mxu0
      %v2328 = vadd.f32 %v2052, %v2327
      %v2329 = vpop.f32.mrb[0].mxu0
      %2330 = vmatprep.mubr.f32.mxu0 0.0
      %2331 = vmatmul.mubr.f32.gmra.mrb[0].mxu0 %v2125
      %v2332 = vpop.f32.mrb[0].mxu0
      %v2333 = vadd.f32 %v2052, %v2332
      %v2334 = vpop.f32.mrb[0].mxu0
      %2335 = vmatprep.mubr.f32.mxu0 0.0
      %2336 = vmatmul.mubr.f32.gmra.mrb[0].mxu0 %v2128
      %v2337 = vpop.f32.mrb[0].mxu0
      %v2338 = vadd.f32 %v2052, %v2337
      %v2339 = vpop.f32.mrb[0].mxu0
      %2340 = vmatprep.mubr.f32.mxu0 0.0
      %2341 = vmatmul.mubr.f32.gmra.mrb[0].mxu0 %v2131
      %v2342 = vpop.f32.mrb[0].mxu0
      %v2343 = vadd.f32 %v2052, %v2342
      %v2344 = vpop.f32.mrb[0].mxu0
      %2345 = vmatprep.mubr.f32.mxu0 0.0
      %2346 = vmatmul.mubr.f32.gmra.mrb[0].mxu0 %v2134
      %v2347 = vpop.f32.mrb[0].mxu0
      %v2348 = vadd.f32 %v2052, %v2347
      %v2349 = vpop.f32.mrb[0].mxu0
      %2350 = vmatprep.mubr.f32.mxu0 0.0
      %2351 = vmatmul.mubr.f32.gmra.mrb[0].mxu0 %v2137
      %v2352 = vpop.f32.mrb[0].mxu0
      %v2353 = vadd.f32 %v2052, %v2352
      %v2354 = vpop.f32.mrb[0].mxu0
      %2355 = vmatprep.mubr.f32.mxu0 0.0
      %2356 = vmatmul.mubr.f32.gmra.mrb[0].mxu0 %v2140
      %v2357 = vpop.f32.mrb[0].mxu0
      %v2358 = vadd.f32 %v2052, %v2357
      %v2359 = vpop.f32.mrb[0].mxu0
      %2360 = vmatprep.mubr.f32.mxu0 0.0
      %2361 = vmatmul.mubr.f32.gmra.mrb[0].mxu0 %v2143
      %v2362 = vpop.f32.mrb[0].mxu0
      %v2363 = vadd.f32 %v2052, %v2362
      %v2364 = vpop.f32.mrb[0].mxu0
      %2365 = vmatprep.mubr.f32.mxu0 0.0
      %2366 = vmatmul.mubr.f32.gmra.mrb[0].mxu0 %v2146
      %v2367 = vpop.f32.mrb[0].mxu0
      %v2368 = vadd.f32 %v2052, %v2367
      %v2369 = vpop.f32.mrb[0].mxu0
      %2370 = vmatprep.mubr.f32.mxu0 0.0
      %2371 = vmatmul.mubr.f32.gmra.mrb[0].mxu0 %v2149
      %v2372 = vpop.f32.mrb[0].mxu0
      %v2373 = vadd.f32 %v2052, %v2372
      %v2374 = vpop.f32.mrb[0].mxu0
      %2375 = vdwg.mxu0
      %2376 = vst.msk [vmem:[%s278] sm:$0xff] %vm319, %v2218
      %2377 = vst.msk [vmem:[%s278 + $0x8] sm:$0xff] %vm319, %v2223
      %2378 = vst.msk [vmem:[%s278 + $0x10] sm:$0xff] %vm319, %v2228
      %2379 = vst.msk [vmem:[%s278 + $0x18] sm:$0xff] %vm319, %v2233
      %2380 = vst.msk [vmem:[%s278 + $0x20] sm:$0xff] %vm319, %v2238
      %2381 = vst.msk [vmem:[%s278 + $0x28] sm:$0xff] %vm319, %v2243
      %2382 = vst.msk [vmem:[%s278 + $0x30] sm:$0xff] %vm319, %v2248
      %2383 = vst.msk [vmem:[%s278 + $0x38] sm:$0xff] %vm319, %v2253
      %2384 = vst.msk [vmem:[%s278 + $0x40] sm:$0xff] %vm319, %v2258
      %2385 = vst.msk [vmem:[%s278 + $0x48] sm:$0xff] %vm319, %v2263
      %2386 = vst.msk [vmem:[%s278 + $0x50] sm:$0xff] %vm319, %v2268
      %2387 = vst.msk [vmem:[%s278 + $0x58] sm:$0xff] %vm319, %v2273
      %2388 = vst.msk [vmem:[%s278 + $0x60] sm:$0xff] %vm319, %v2278
      %2389 = vst.msk [vmem:[%s278 + $0x68] sm:$0xff] %vm319, %v2283
      %2390 = vst.msk [vmem:[%s278 + $0x70] sm:$0xff] %vm319, %v2288
      %2391 = vst.msk [vmem:[%s278 + $0x78] sm:$0xff] %vm319, %v2293
      %2392 = vst.msk [vmem:[%s278 + $0x80] sm:$0xff] %vm319, %v2298
      %2393 = vst.msk [vmem:[%s278 + $0x88] sm:$0xff] %vm319, %v2303
      %2394 = vst.msk [vmem:[%s278 + $0x90] sm:$0xff] %vm319, %v2308
      %2395 = vst.msk [vmem:[%s278 + $0x98] sm:$0xff] %vm319, %v2313
      %2396 = vst.msk [vmem:[%s278 + $0xa0] sm:$0xff] %vm319, %v2318
      %2397 = vst.msk [vmem:[%s278 + $0xa8] sm:$0xff] %vm319, %v2323
      %2398 = vst.msk [vmem:[%s278 + $0xb0] sm:$0xff] %vm319, %v2328
      %2399 = vst.msk [vmem:[%s278 + $0xb8] sm:$0xff] %vm319, %v2333
      %2400 = vst.msk [vmem:[%s278 + $0xc0] sm:$0xff] %vm319, %v2338
      %2401 = vst.msk [vmem:[%s278 + $0xc8] sm:$0xff] %vm319, %v2343
      %2402 = vst.msk [vmem:[%s278 + $0xd0] sm:$0xff] %vm319, %v2348
      %2403 = vst.msk [vmem:[%s278 + $0xd8] sm:$0xff] %vm319, %v2353
      %2404 = vst.msk [vmem:[%s278 + $0xe0] sm:$0xff] %vm319, %v2358
      %2405 = vst.msk [vmem:[%s278 + $0xe8] sm:$0xff] %vm319, %v2363
      %2406 = vst.msk [vmem:[%s278 + $0xf0] sm:$0xff] %vm319, %v2368
      %2407 = vst.msk [vmem:[%s278 + $0xf8] sm:$0xff] %vm319, %v2373
      %p2408 = scmp.lt.s32.totalorder %s18, 1
      %s2409 = scalar_select %p2408, %s18, 1
      %s2410 = smul.addr %s2409, 32
      %s2411 = smul.addr %s2410, 8
      %s2412 = scalar_lea.vmem %s7, %s2411
      // Predicated region
      $region49: #{tpu_custom_call.1} parent=47 // pred_check
        %p2413 = pneg %p188
      $region50: #{tpu_custom_call.1} parent=47 // pred_check_branch
        %2415 = sbr.rel (%p2413) target = $region52
      $region51: #{tpu_custom_call.1} parent=47 // pred_region
        _
      $region52: #{tpu_custom_call.1} parent=47 // pred_fallthru
        _
    $region48: #{tpu_custom_call.1} parent=5 // pred_fallthru
      _
    %p2416 = scmp.le.s32.totalorder 2, %s13
    // Predicated region
    $region53: #{tpu_custom_call.1} parent=5 // pred_check
      %p2417 = pneg %p2416
    $region54: #{tpu_custom_call.1} parent=5 // pred_check_branch
      %2419 = sbr.rel (%p2417) target = $region56
    $region55: #{tpu_custom_call.1} parent=5 // pred_region
      %s2420 = ssub.s32 %s13, 2
      // Predicated region
      $region57: #{tpu_custom_call.1} parent=55 // pred_check
        %p2421 = pneg %p194
      $region58: #{tpu_custom_call.1} parent=55 // pred_check_branch
        %2423 = sbr.rel (%p2421) target = $region60
      $region59: #{tpu_custom_call.1} parent=55 // pred_region
        %p2424 = scmp.lt.s32.totalorder %s19, 1
        %s2425 = scalar_select %p2424, %s19, 1
        %s2426 = smul.addr %s2425, 32
        %s2427 = smul.addr %s2426, 8
        %s2428 = scalar_lea.vmem %s7, %s2427
      $region60: #{tpu_custom_call.1} parent=55 // pred_fallthru
        _
    $region56: #{tpu_custom_call.1} parent=5 // pred_fallthru
      _
  $region6: #{tpu_custom_call.1} parent=0 // loop_footer
    %s17 = sadd.s32 1, %s13
  $region7: #{tpu_custom_call.1} parent=0 // loop_footer_branch
    %12 = sbr.rel target = $region3
  $region8: #{tpu_custom_call.1} parent=0 // loop_exit
    _

</llo_original>
